<compile_context>
chip_gen: v5e
topology: v5e:2x2
jax: 0.10.0
libtpu: 0.0.40
codegen_flags: <defaults>
</compile_context>

<pallas_src>
import math

import jax
import jax.numpy as jnp
import numpy as np
from jax.experimental import pallas as pl
from jax.experimental.pallas import tpu as pltpu

EPS = 1e-5
NUM_GROUPS = 8


# ---------------------------------------------------------------------------
# host-side packing helpers
# ---------------------------------------------------------------------------
def _pack_rowslab_weight(w_oidhw, W):
    """(C_out, C_in, 3, 3, 3) torch-layout conv weight -> (9*W*C_in, W*C_out).

    Row index = ((kd*3 + kh) * W + w_in) * C_in + ci   (w_in in un-padded coords)
    Col index = w_out * C_out + co
    Entry     = weight[co, ci, kd, kh, w_in - w_out + 1] if that tap is in range,
                0 otherwise (this bakes the W-axis 'SAME' zero padding into the
                matrix, so the kernel never needs a W halo).
    """
    w = np.asarray(w_oidhw, np.float32)
    C_out, C_in = int(w.shape[0]), int(w.shape[1])
    m = np.zeros((9 * W * C_in, W * C_out), np.float32)
    for kd in range(3):
        for kh in range(3):
            t = kd * 3 + kh
            for w_out in range(W):
                for kw in range(3):
                    w_in = w_out + kw - 1
                    if 0 <= w_in < W:
                        r = (t * W + w_in) * C_in
                        c = w_out * C_out
                        m[r:r + C_in, c:c + C_out] = w[:, :, kd, kh, kw].T
    return jnp.asarray(m)


def _group_mean_matrix(W, C_out, num_groups, dhw):
    """(W*C_out, W*C_out) matrix M s.t. (per_lane_sums @ M)[l] = mean of l's group."""
    gs = C_out // num_groups
    lane_group = (np.arange(W * C_out) % C_out) // gs
    m = (lane_group[:, None] == lane_group[None, :]).astype(np.float32)
    return jnp.asarray(m / float(dhw * gs))


def make_double_conv_params(w1_oidhw, b1, g1, be1, w2_oidhw, b2, g2, be2,
                            *, D, H, W, num_groups=NUM_GROUPS):
    C_out = int(w1_oidhw.shape[0])
    assert C_out % num_groups == 0

    def tile_c(v):
        # per-channel vector -> (1, W*C_out) lane-dense row (lane = w*C_out + c)
        return jnp.tile(jnp.asarray(v, jnp.float32).reshape(1, C_out), (1, W))

    return {
        "w1": _pack_rowslab_weight(w1_oidhw, W),
        "b1": tile_c(b1), "g1": tile_c(g1), "be1": tile_c(be1),
        "w2": _pack_rowslab_weight(w2_oidhw, W),
        "b2": tile_c(b2), "g2": tile_c(g2), "be2": tile_c(be2),
        "gmatd": _group_mean_matrix(W, C_out, num_groups, D * H * W),
    }


# ---------------------------------------------------------------------------
# fused DoubleConv Pallas kernel
# ---------------------------------------------------------------------------
def _make_kernel(D, H, W, C_in, C_out):
    R = D * H            # rows of the lane-dense activation view
    Lin = W * C_in       # lanes per un-padded input row
    Lout = W * C_out     # lanes per output row (== 128 at the test shapes)

    def _gn_relu(hd, gamma, beta, gmatd):
        # hd: (R, Lout) lane-dense conv output, bias already added.
        s1 = jnp.sum(hd, axis=0, keepdims=True)                 # (1, Lout)
        s2 = jnp.sum(hd * hd, axis=0, keepdims=True)            # (1, Lout)
        mean = jnp.dot(s1, gmatd, preferred_element_type=jnp.float32)
        msq = jnp.dot(s2, gmatd, preferred_element_type=jnp.float32)
        inv = jax.lax.rsqrt(msq - mean * mean + EPS)
        scale = inv * gamma
        shift = beta - mean * scale
        return jnp.maximum(hd * scale + shift, 0.0)

    def kernel(xpad_ref, w1_ref, b1_ref, g1_ref, be1_ref,
               w2_ref, b2_ref, g2_ref, be2_ref, gmatd_ref,
               out_ref, lhs1_ref, lhs2_ref, pad_ref):
        gmatd = gmatd_ref[...]

        # ---- conv1: row-slab im2col (9 lane-dense slab copies) + one matmul ----
        for kd in range(3):
            for kh in range(3):
                t = kd * 3 + kh
                slab = xpad_ref[kd:kd + D, kh:kh + H, :]          # (D, H, Lin)
                lhs1_ref[:, t * Lin:(t + 1) * Lin] = slab.reshape(R, Lin)
        h1 = jnp.dot(lhs1_ref[...], w1_ref[...],
                     preferred_element_type=jnp.float32) + b1_ref[...]   # (R, Lout)
        y1 = _gn_relu(h1, g1_ref[...], be1_ref[...], gmatd)

        # ---- stage GN1 output with a 1-row zero halo in D and H only ----
        # (W padding is folded into the packed weights, so no W halo.)  Halo is
        # re-zeroed every step: the batch axis is "parallel", so a one-shot
        # program_id()==0 init is not valid under a megacore split; the interior
        # is fully overwritten and never re-zeroed.  The column-halo writes skip
        # the corner rows already covered by the row-halo writes.
        pad_ref[0:1, :, :] = jnp.zeros((1, H + 2, Lout), jnp.float32)
        pad_ref[D + 1:D + 2, :, :] = jnp.zeros((1, H + 2, Lout), jnp.float32)
        pad_ref[1:1 + D, 0:1, :] = jnp.zeros((D, 1, Lout), jnp.float32)
        pad_ref[1:1 + D, H + 1:H + 2, :] = jnp.zeros((D, 1, Lout), jnp.float32)
        pad_ref[1:1 + D, 1:1 + H, :] = y1.reshape(D, H, Lout)

        # ---- conv2: same scheme reading the staged, D/H-padded activations ----
        for kd in range(3):
            for kh in range(3):
                t = kd * 3 + kh
                slab = pad_ref[kd:kd + D, kh:kh + H, :]           # (D, H, Lout)
                lhs2_ref[:, t * Lout:(t + 1) * Lout] = slab.reshape(R, Lout)
        h2 = jnp.dot(lhs2_ref[...], w2_ref[...],
                     preferred_element_type=jnp.float32) + b2_ref[...]
        out_ref[...] = _gn_relu(h2, g2_ref[...], be2_ref[...], gmatd)

    return kernel


def double_conv_pallas(x_ncdhw, params):
    """x: (N, C_in, D, H, W) f32 -> (N, C_out, D, H, W) f32 (DoubleConv forward)."""
    N, C_in, D, H, W = x_ncdhw.shape
    R = D * H
    Lin = W * C_in
    C_out = params["w1"].shape[1] // W
    Lout = W * C_out
    assert params["w1"].shape == (9 * Lin, Lout)
    assert params["w2"].shape == (9 * Lout, Lout)

    # NCDHW -> (N, D, H, W*C) lane-flattened, zero-padded by 1 in D and H only.
    x = jnp.transpose(x_ncdhw, (0, 2, 3, 4, 1)).reshape(N, D, H, Lin)
    xpad = jnp.pad(x, ((0, 0), (1, 1), (1, 1), (0, 0)))

    kernel = _make_kernel(D, H, W, C_in, C_out)

    out = pl.pallas_call(
        kernel,
        out_shape=jax.ShapeDtypeStruct((N, R, Lout), jnp.float32),
        grid=(N,),
        in_specs=[
            pl.BlockSpec((None, D + 2, H + 2, Lin), lambda n: (n, 0, 0, 0)),
            pl.BlockSpec((9 * Lin, Lout), lambda n: (0, 0)),
            pl.BlockSpec((1, Lout), lambda n: (0, 0)),
            pl.BlockSpec((1, Lout), lambda n: (0, 0)),
            pl.BlockSpec((1, Lout), lambda n: (0, 0)),
            pl.BlockSpec((9 * Lout, Lout), lambda n: (0, 0)),
            pl.BlockSpec((1, Lout), lambda n: (0, 0)),
            pl.BlockSpec((1, Lout), lambda n: (0, 0)),
            pl.BlockSpec((1, Lout), lambda n: (0, 0)),
            pl.BlockSpec((Lout, Lout), lambda n: (0, 0)),
        ],
        out_specs=pl.BlockSpec((None, R, Lout), lambda n: (n, 0, 0)),
        scratch_shapes=[
            pltpu.VMEM((R, 9 * Lin), jnp.float32),          # conv1 row-slab LHS
            pltpu.VMEM((R, 9 * Lout), jnp.float32),         # conv2 row-slab LHS
            pltpu.VMEM((D + 2, H + 2, Lout), jnp.float32),  # GN1 out, D/H-padded
        ],
        compiler_params=pltpu.CompilerParams(dimension_semantics=("parallel",)),
    )(xpad, params["w1"], params["b1"], params["g1"], params["be1"],
      params["w2"], params["b2"], params["g2"], params["be2"], params["gmatd"])

    out = out.reshape(N, D, H, W, C_out)
    return jnp.transpose(out, (0, 4, 1, 2, 3))


# ---------------------------------------------------------------------------
# Up.forward glue: trilinear 2x upsample (align_corners=True) + pad + concat
# ---------------------------------------------------------------------------
def _linear_upsample_axis(x, axis, out_size):
    in_size = x.shape[axis]
    if in_size == out_size:
        return x
    if in_size == 1:
        return jnp.repeat(x, out_size, axis=axis)
    pos = jnp.arange(out_size, dtype=jnp.float32) * ((in_size - 1) / (out_size - 1))
    i0 = jnp.clip(jnp.floor(pos).astype(jnp.int32), 0, in_size - 2)
    frac = pos - i0.astype(jnp.float32)
    a = jnp.take(x, i0, axis=axis)
    b = jnp.take(x, i0 + 1, axis=axis)
    shape = [1] * x.ndim
    shape[axis] = out_size
    frac = frac.reshape(shape)
    return a * (1.0 - frac) + b * frac


def _upsample_trilinear_2x_align_corners(x):
    # x: (N, C, D, H, W) -> (N, C, 2D, 2H, 2W); matches nn.Upsample(scale_factor=2,
    # mode='trilinear', align_corners=True).
    for ax in (2, 3, 4):
        x = _linear_upsample_axis(x, ax, 2 * x.shape[ax])
    return x


def _match_and_concat(x1, x2):
    x1u = _upsample_trilinear_2x_align_corners(x1)
    dz = x2.shape[2] - x1u.shape[2]
    dy = x2.shape[3] - x1u.shape[3]
    dx = x2.shape[4] - x1u.shape[4]
    x1u = jnp.pad(x1u, ((0, 0), (0, 0),
                        (dz // 2, dz - dz // 2),
                        (dy // 2, dy - dy // 2),
                        (dx // 2, dx - dx // 2)))
    return jnp.concatenate([x2, x1u], axis=1)


def up_forward_pallas(x1, x2, params):
    """Up.forward(x1, x2) with the DoubleConv running as a Pallas TPU kernel."""
    x = _match_and_concat(x1, x2)
    return double_conv_pallas(x, params)


# ---------------------------------------------------------------------------
# pure-JAX reference (ground truth for the correctness check)
# ---------------------------------------------------------------------------
def _gn_ref(y, gamma, beta, groups):
    N, D, H, W, C = y.shape
    gs = C // groups
    yg = y.reshape(N, D, H, W, groups, gs)
    mean = yg.mean(axis=(1, 2, 3, 5), keepdims=True)
    var = ((yg - mean) ** 2).mean(axis=(1, 2, 3, 5), keepdims=True)
    yn = ((yg - mean) / jnp.sqrt(var + EPS)).reshape(N, D, H, W, C)
    return yn * gamma.reshape(1, 1, 1, 1, C) + beta.reshape(1, 1, 1, 1, C)


def _double_conv_ref(x_ncdhw, w1_oidhw, b1, g1, be1, w2_oidhw, b2, g2, be2):
    x = jnp.transpose(x_ncdhw, (0, 2, 3, 4, 1))  # NDHWC
    dn = ("NDHWC", "DHWIO", "NDHWC")
    hp = jax.lax.Precision.HIGHEST
    w1 = jnp.transpose(w1_oidhw, (2, 3, 4, 1, 0))
    w2 = jnp.transpose(w2_oidhw, (2, 3, 4, 1, 0))
    h = jax.lax.conv_general_dilated(x, w1, (1, 1, 1), "SAME",
                                     dimension_numbers=dn, precision=hp) + b1
    h = jnp.maximum(_gn_ref(h, g1, be1, NUM_GROUPS), 0.0)
    h = jax.lax.conv_general_dilated(h, w2, (1, 1, 1), "SAME",
                                     dimension_numbers=dn, precision=hp) + b2
    h = jnp.maximum(_gn_ref(h, g2, be2, NUM_GROUPS), 0.0)
    return jnp.transpose(h, (0, 4, 1, 2, 3))


def up_forward_ref(x1, x2, w1_oidhw, b1, g1, be1, w2_oidhw, b2, g2, be2):
    x = _match_and_concat(x1, x2)
    return _double_conv_ref(x, w1_oidhw, b1, g1, be1, w2_oidhw, b2, g2, be2)


# ---------------------------------------------------------------------------
if __name__ == "__main__":
    # Up(in_channels=8, out_channels=16): x1 (decoder path) has 4 channels at
    # 4^3, x2 (skip) has 4 channels at 8^3 -> concat gives 8 channels at 8^3.
    N = 2
    C_up, C_skip = 4, 4
    C_in = C_up + C_skip
    C_out = 16                       # divisible by num_groups=8; W*C_out = 128
    D1 = H1 = W1 = 4
    D = H = W = 8

    key = jax.random.PRNGKey(0)
    kx1, kx2, kw1, kb1, kw2, kb2 = jax.random.split(key, 6)

    x1 = jax.random.normal(kx1, (N, C_up, D1, H1, W1), jnp.float32)
    x2 = jax.random.normal(kx2, (N, C_skip, D, H, W), jnp.float32)

    # PyTorch-style Conv3d init (uniform +-1/sqrt(fan_in)); GN gamma=1, beta=0.
    fan1 = C_in * 27
    bd1 = 1.0 / math.sqrt(fan1)
    w1_oidhw = jax.random.uniform(kw1, (C_out, C_in, 3, 3, 3), jnp.float32, -bd1, bd1)
    b1 = jax.random.uniform(kb1, (C_out,), jnp.float32, -bd1, bd1)

    fan2 = C_out * 27
    bd2 = 1.0 / math.sqrt(fan2)
    w2_oidhw = jax.random.uniform(kw2, (C_out, C_out, 3, 3, 3), jnp.float32, -bd2, bd2)
    b2 = jax.random.uniform(jax.random.PRNGKey(1), (C_out,), jnp.float32, -bd2, bd2)

    g1 = jnp.ones((C_out,), jnp.float32)
    be1 = jnp.zeros((C_out,), jnp.float32)
    g2 = jnp.ones((C_out,), jnp.float32)
    be2 = jnp.zeros((C_out,), jnp.float32)

    params = make_double_conv_params(w1_oidhw, b1, g1, be1,
                                     w2_oidhw, b2, g2, be2,
                                     D=D, H=H, W=W, num_groups=NUM_GROUPS)

    out = up_forward_pallas(x1, x2, params)
    out = jax.block_until_ready(out)

    ref = up_forward_ref(x1, x2, w1_oidhw, b1, g1, be1, w2_oidhw, b2, g2, be2)
    ref = jax.block_until_ready(ref)

    assert out.shape == (N, C_out, D, H, W), out.shape
    max_err = float(jnp.max(jnp.abs(out - ref)))
    mean_err = float(jnp.mean(jnp.abs(out - ref)))
    # default (non-HIGHEST) MXU precision: allow bf16-level rounding noise
    assert max_err < 3e-2 and mean_err < 3e-3, (max_err, mean_err)

    print("KERNEL_OK")
</pallas_src>

<mosaic_0001>
module attributes {stable_mosaic.version = 11 : i64} {
  func.func @kernel(%arg0: i32, %arg1: memref<1x10x10x64xf32, #tpu.memory_space<vmem>>, %arg2: memref<576x128xf32, #tpu.memory_space<vmem>>, %arg3: memref<1x128xf32, #tpu.memory_space<vmem>>, %arg4: memref<1x128xf32, #tpu.memory_space<vmem>>, %arg5: memref<1x128xf32, #tpu.memory_space<vmem>>, %arg6: memref<1152x128xf32, #tpu.memory_space<vmem>>, %arg7: memref<1x128xf32, #tpu.memory_space<vmem>>, %arg8: memref<1x128xf32, #tpu.memory_space<vmem>>, %arg9: memref<1x128xf32, #tpu.memory_space<vmem>>, %arg10: memref<128x128xf32, #tpu.memory_space<vmem>>, %arg11: memref<1x64x128xf32, #tpu.memory_space<vmem>>, %arg12: memref<64x576xf32, #tpu.memory_space<vmem>>, %arg13: memref<64x1152xf32, #tpu.memory_space<vmem>>, %arg14: memref<10x10x128xf32, #tpu.memory_space<vmem>>) attributes {dimension_semantics = [#tpu.dimension_semantics<parallel>], iteration_bounds = array<i64: 2>, scalar_prefetch = 0 : i64, scratch_operands = 3 : i64, tpu.core_type = #tpu.core_type<tc>, window_params = [{transform_indices = @transform_0, window_bounds = array<i64: 1, 10, 10, 64>}, {pipeline_mode = #tpu.pipeline_mode<synchronous>, transform_indices = @transform_1, window_bounds = array<i64: 576, 128>}, {pipeline_mode = #tpu.pipeline_mode<synchronous>, transform_indices = @transform_2, window_bounds = array<i64: 1, 128>}, {pipeline_mode = #tpu.pipeline_mode<synchronous>, transform_indices = @transform_3, window_bounds = array<i64: 1, 128>}, {pipeline_mode = #tpu.pipeline_mode<synchronous>, transform_indices = @transform_4, window_bounds = array<i64: 1, 128>}, {pipeline_mode = #tpu.pipeline_mode<synchronous>, transform_indices = @transform_5, window_bounds = array<i64: 1152, 128>}, {pipeline_mode = #tpu.pipeline_mode<synchronous>, transform_indices = @transform_6, window_bounds = array<i64: 1, 128>}, {pipeline_mode = #tpu.pipeline_mode<synchronous>, transform_indices = @transform_7, window_bounds = array<i64: 1, 128>}, {pipeline_mode = #tpu.pipeline_mode<synchronous>, transform_indices = @transform_8, window_bounds = array<i64: 1, 128>}, {pipeline_mode = #tpu.pipeline_mode<synchronous>, transform_indices = @transform_9, window_bounds = array<i64: 128, 128>}, {transform_indices = @transform_10, window_bounds = array<i64: 1, 64, 128>}]} {
    %c0 = arith.constant 0 : index
    %c0_0 = arith.constant 0 : index
    %0 = vector.load %arg10[%c0, %c0_0] : memref<128x128xf32, #tpu.memory_space<vmem>>, vector<128x128xf32>
    %c0_1 = arith.constant 0 : index
    %c0_2 = arith.constant 0 : index
    %c0_3 = arith.constant 0 : index
    %c0_4 = arith.constant 0 : index
    %1 = vector.load %arg1[%c0_1, %c0_2, %c0_3, %c0_4] : memref<1x10x10x64xf32, #tpu.memory_space<vmem>>, vector<1x8x8x64xf32>
    %2 = vector.shape_cast %1 : vector<1x8x8x64xf32> to vector<8x8x64xf32>
    %3 = vector.shape_cast %2 : vector<8x8x64xf32> to vector<64x64xf32>
    %c0_5 = arith.constant 0 : index
    %c0_6 = arith.constant 0 : index
    %4 = vector.load %arg12[%c0_5, %c0_6] : memref<64x576xf32, #tpu.memory_space<vmem>>, vector<64x64xf32>
    tpu.vector_store %arg12[%c0_5, %c0_6], %3 {strides = array<i32>} : memref<64x576xf32, #tpu.memory_space<vmem>>, vector<64x64xf32>,
    %c0_7 = arith.constant 0 : index
    %c0_8 = arith.constant 0 : index
    %c1 = arith.constant 1 : index
    %c0_9 = arith.constant 0 : index
    %5 = vector.load %arg1[%c0_7, %c0_8, %c1, %c0_9] : memref<1x10x10x64xf32, #tpu.memory_space<vmem>>, vector<1x8x8x64xf32>
    %6 = vector.shape_cast %5 : vector<1x8x8x64xf32> to vector<8x8x64xf32>
    %7 = vector.shape_cast %6 : vector<8x8x64xf32> to vector<64x64xf32>
    %c0_10 = arith.constant 0 : index
    %c64 = arith.constant 64 : index
    %8 = vector.load %arg12[%c0_10, %c64] : memref<64x576xf32, #tpu.memory_space<vmem>>, vector<64x64xf32>
    tpu.vector_store %arg12[%c0_10, %c64], %7 {strides = array<i32>} : memref<64x576xf32, #tpu.memory_space<vmem>>, vector<64x64xf32>,
    %c0_11 = arith.constant 0 : index
    %c0_12 = arith.constant 0 : index
    %c2 = arith.constant 2 : index
    %c0_13 = arith.constant 0 : index
    %9 = vector.load %arg1[%c0_11, %c0_12, %c2, %c0_13] : memref<1x10x10x64xf32, #tpu.memory_space<vmem>>, vector<1x8x8x64xf32>
    %10 = vector.shape_cast %9 : vector<1x8x8x64xf32> to vector<8x8x64xf32>
    %11 = vector.shape_cast %10 : vector<8x8x64xf32> to vector<64x64xf32>
    %c0_14 = arith.constant 0 : index
    %c128 = arith.constant 128 : index
    %12 = vector.load %arg12[%c0_14, %c128] : memref<64x576xf32, #tpu.memory_space<vmem>>, vector<64x64xf32>
    tpu.vector_store %arg12[%c0_14, %c128], %11 {strides = array<i32>} : memref<64x576xf32, #tpu.memory_space<vmem>>, vector<64x64xf32>,
    %c0_15 = arith.constant 0 : index
    %c1_16 = arith.constant 1 : index
    %c0_17 = arith.constant 0 : index
    %c0_18 = arith.constant 0 : index
    %13 = vector.load %arg1[%c0_15, %c1_16, %c0_17, %c0_18] : memref<1x10x10x64xf32, #tpu.memory_space<vmem>>, vector<1x8x8x64xf32>
    %14 = vector.shape_cast %13 : vector<1x8x8x64xf32> to vector<8x8x64xf32>
    %15 = vector.shape_cast %14 : vector<8x8x64xf32> to vector<64x64xf32>
    %c0_19 = arith.constant 0 : index
    %c192 = arith.constant 192 : index
    %16 = vector.load %arg12[%c0_19, %c192] : memref<64x576xf32, #tpu.memory_space<vmem>>, vector<64x64xf32>
    tpu.vector_store %arg12[%c0_19, %c192], %15 {strides = array<i32>} : memref<64x576xf32, #tpu.memory_space<vmem>>, vector<64x64xf32>,
    %c0_20 = arith.constant 0 : index
    %c1_21 = arith.constant 1 : index
    %c1_22 = arith.constant 1 : index
    %c0_23 = arith.constant 0 : index
    %17 = vector.load %arg1[%c0_20, %c1_21, %c1_22, %c0_23] : memref<1x10x10x64xf32, #tpu.memory_space<vmem>>, vector<1x8x8x64xf32>
    %18 = vector.shape_cast %17 : vector<1x8x8x64xf32> to vector<8x8x64xf32>
    %19 = vector.shape_cast %18 : vector<8x8x64xf32> to vector<64x64xf32>
    %c0_24 = arith.constant 0 : index
    %c256 = arith.constant 256 : index
    %20 = vector.load %arg12[%c0_24, %c256] : memref<64x576xf32, #tpu.memory_space<vmem>>, vector<64x64xf32>
    tpu.vector_store %arg12[%c0_24, %c256], %19 {strides = array<i32>} : memref<64x576xf32, #tpu.memory_space<vmem>>, vector<64x64xf32>,
    %c0_25 = arith.constant 0 : index
    %c1_26 = arith.constant 1 : index
    %c2_27 = arith.constant 2 : index
    %c0_28 = arith.constant 0 : index
    %21 = vector.load %arg1[%c0_25, %c1_26, %c2_27, %c0_28] : memref<1x10x10x64xf32, #tpu.memory_space<vmem>>, vector<1x8x8x64xf32>
    %22 = vector.shape_cast %21 : vector<1x8x8x64xf32> to vector<8x8x64xf32>
    %23 = vector.shape_cast %22 : vector<8x8x64xf32> to vector<64x64xf32>
    %c0_29 = arith.constant 0 : index
    %c320 = arith.constant 320 : index
    %24 = vector.load %arg12[%c0_29, %c320] : memref<64x576xf32, #tpu.memory_space<vmem>>, vector<64x64xf32>
    tpu.vector_store %arg12[%c0_29, %c320], %23 {strides = array<i32>} : memref<64x576xf32, #tpu.memory_space<vmem>>, vector<64x64xf32>,
    %c0_30 = arith.constant 0 : index
    %c2_31 = arith.constant 2 : index
    %c0_32 = arith.constant 0 : index
    %c0_33 = arith.constant 0 : index
    %25 = vector.load %arg1[%c0_30, %c2_31, %c0_32, %c0_33] : memref<1x10x10x64xf32, #tpu.memory_space<vmem>>, vector<1x8x8x64xf32>
    %26 = vector.shape_cast %25 : vector<1x8x8x64xf32> to vector<8x8x64xf32>
    %27 = vector.shape_cast %26 : vector<8x8x64xf32> to vector<64x64xf32>
    %c0_34 = arith.constant 0 : index
    %c384 = arith.constant 384 : index
    %28 = vector.load %arg12[%c0_34, %c384] : memref<64x576xf32, #tpu.memory_space<vmem>>, vector<64x64xf32>
    tpu.vector_store %arg12[%c0_34, %c384], %27 {strides = array<i32>} : memref<64x576xf32, #tpu.memory_space<vmem>>, vector<64x64xf32>,
    %c0_35 = arith.constant 0 : index
    %c2_36 = arith.constant 2 : index
    %c1_37 = arith.constant 1 : index
    %c0_38 = arith.constant 0 : index
    %29 = vector.load %arg1[%c0_35, %c2_36, %c1_37, %c0_38] : memref<1x10x10x64xf32, #tpu.memory_space<vmem>>, vector<1x8x8x64xf32>
    %30 = vector.shape_cast %29 : vector<1x8x8x64xf32> to vector<8x8x64xf32>
    %31 = vector.shape_cast %30 : vector<8x8x64xf32> to vector<64x64xf32>
    %c0_39 = arith.constant 0 : index
    %c448 = arith.constant 448 : index
    %32 = vector.load %arg12[%c0_39, %c448] : memref<64x576xf32, #tpu.memory_space<vmem>>, vector<64x64xf32>
    tpu.vector_store %arg12[%c0_39, %c448], %31 {strides = array<i32>} : memref<64x576xf32, #tpu.memory_space<vmem>>, vector<64x64xf32>,
    %c0_40 = arith.constant 0 : index
    %c2_41 = arith.constant 2 : index
    %c2_42 = arith.constant 2 : index
    %c0_43 = arith.constant 0 : index
    %33 = vector.load %arg1[%c0_40, %c2_41, %c2_42, %c0_43] : memref<1x10x10x64xf32, #tpu.memory_space<vmem>>, vector<1x8x8x64xf32>
    %34 = vector.shape_cast %33 : vector<1x8x8x64xf32> to vector<8x8x64xf32>
    %35 = vector.shape_cast %34 : vector<8x8x64xf32> to vector<64x64xf32>
    %c0_44 = arith.constant 0 : index
    %c512 = arith.constant 512 : index
    %36 = vector.load %arg12[%c0_44, %c512] : memref<64x576xf32, #tpu.memory_space<vmem>>, vector<64x64xf32>
    tpu.vector_store %arg12[%c0_44, %c512], %35 {strides = array<i32>} : memref<64x576xf32, #tpu.memory_space<vmem>>, vector<64x64xf32>,
    %c0_45 = arith.constant 0 : index
    %c0_46 = arith.constant 0 : index
    %37 = vector.load %arg12[%c0_45, %c0_46] : memref<64x576xf32, #tpu.memory_space<vmem>>, vector<64x576xf32>
    %c0_47 = arith.constant 0 : index
    %c0_48 = arith.constant 0 : index
    %38 = vector.load %arg2[%c0_47, %c0_48] : memref<576x128xf32, #tpu.memory_space<vmem>>, vector<576x128xf32>
    %cst = arith.constant dense<0.000000e+00> : vector<64x128xf32>
    %39 = tpu.matmul %37, %38, %cst {dimension_numbers = #tpu.dot_dimension_numbers<[1], [0], [0], [1], [0, 0, 1, 1], [], []>} : vector<64x576xf32>, vector<576x128xf32>, vector<64x128xf32> -> vector<64x128xf32>
    %c0_49 = arith.constant 0 : index
    %c0_50 = arith.constant 0 : index
    %40 = vector.load %arg3[%c0_49, %c0_50] : memref<1x128xf32, #tpu.memory_space<vmem>>, vector<1x128xf32>
    %41 = vector.broadcast %40 : vector<1x128xf32> to vector<64x128xf32>
    %42 = arith.addf %39, %41 : vector<64x128xf32>
    %c0_51 = arith.constant 0 : index
    %c0_52 = arith.constant 0 : index
    %43 = vector.load %arg4[%c0_51, %c0_52] : memref<1x128xf32, #tpu.memory_space<vmem>>, vector<1x128xf32>
    %c0_53 = arith.constant 0 : index
    %c0_54 = arith.constant 0 : index
    %44 = vector.load %arg5[%c0_53, %c0_54] : memref<1x128xf32, #tpu.memory_space<vmem>>, vector<1x128xf32>
    %cst_55 = arith.constant dense<0.000000e+00> : vector<128xf32>
    %45 = vector.multi_reduction <add>, %42, %cst_55 [0] : vector<64x128xf32> to vector<128xf32>
    %46 = vector.shape_cast %45 : vector<128xf32> to vector<1x128xf32>
    %47 = arith.mulf %42, %42 : vector<64x128xf32>
    %cst_56 = arith.constant dense<0.000000e+00> : vector<128xf32>
    %48 = vector.multi_reduction <add>, %47, %cst_56 [0] : vector<64x128xf32> to vector<128xf32>
    %49 = vector.shape_cast %48 : vector<128xf32> to vector<1x128xf32>
    %cst_57 = arith.constant dense<0.000000e+00> : vector<1x128xf32>
    %50 = tpu.matmul %46, %0, %cst_57 {dimension_numbers = #tpu.dot_dimension_numbers<[1], [0], [0], [1], [0, 0, 1, 1], [], []>} : vector<1x128xf32>, vector<128x128xf32>, vector<1x128xf32> -> vector<1x128xf32>
    %cst_58 = arith.constant dense<0.000000e+00> : vector<1x128xf32>
    %51 = tpu.matmul %49, %0, %cst_58 {dimension_numbers = #tpu.dot_dimension_numbers<[1], [0], [0], [1], [0, 0, 1, 1], [], []>} : vector<1x128xf32>, vector<128x128xf32>, vector<1x128xf32> -> vector<1x128xf32>
    %52 = arith.mulf %50, %50 : vector<1x128xf32>
    %53 = arith.subf %51, %52 : vector<1x128xf32>
    %cst_59 = arith.constant 9.99999974E-6 : f32
    %54 = vector.broadcast %cst_59 : f32 to vector<1x128xf32>
    %55 = arith.addf %53, %54 : vector<1x128xf32>
    %56 = math.rsqrt %55 : vector<1x128xf32>
    %57 = arith.mulf %56, %43 : vector<1x128xf32>
    %58 = arith.mulf %50, %57 : vector<1x128xf32>
    %59 = arith.subf %44, %58 : vector<1x128xf32>
    %60 = vector.broadcast %57 : vector<1x128xf32> to vector<64x128xf32>
    %61 = arith.mulf %42, %60 : vector<64x128xf32>
    %62 = vector.broadcast %59 : vector<1x128xf32> to vector<64x128xf32>
    %63 = arith.addf %61, %62 : vector<64x128xf32>
    %cst_60 = arith.constant 0.000000e+00 : f32
    %64 = vector.broadcast %cst_60 : f32 to vector<64x128xf32>
    %65 = arith.maximumf %63, %64 : vector<64x128xf32>
    %cst_61 = arith.constant 0.000000e+00 : f32
    %66 = vector.broadcast %cst_61 : f32 to vector<1x10x128xf32>
    %c0_62 = arith.constant 0 : index
    %c0_63 = arith.constant 0 : index
    %c0_64 = arith.constant 0 : index
    %67 = vector.load %arg14[%c0_62, %c0_63, %c0_64] : memref<10x10x128xf32, #tpu.memory_space<vmem>>, vector<1x10x128xf32>
    tpu.vector_store %arg14[%c0_62, %c0_63, %c0_64], %66 {strides = array<i32>} : memref<10x10x128xf32, #tpu.memory_space<vmem>>, vector<1x10x128xf32>,
    %cst_65 = arith.constant 0.000000e+00 : f32
    %68 = vector.broadcast %cst_65 : f32 to vector<1x10x128xf32>
    %c9 = arith.constant 9 : index
    %c0_66 = arith.constant 0 : index
    %c0_67 = arith.constant 0 : index
    %69 = vector.load %arg14[%c9, %c0_66, %c0_67] : memref<10x10x128xf32, #tpu.memory_space<vmem>>, vector<1x10x128xf32>
    tpu.vector_store %arg14[%c9, %c0_66, %c0_67], %68 {strides = array<i32>} : memref<10x10x128xf32, #tpu.memory_space<vmem>>, vector<1x10x128xf32>,
    %cst_68 = arith.constant 0.000000e+00 : f32
    %70 = vector.broadcast %cst_68 : f32 to vector<8x1x128xf32>
    %c1_69 = arith.constant 1 : index
    %c0_70 = arith.constant 0 : index
    %c0_71 = arith.constant 0 : index
    %71 = vector.load %arg14[%c1_69, %c0_70, %c0_71] : memref<10x10x128xf32, #tpu.memory_space<vmem>>, vector<8x1x128xf32>
    tpu.vector_store %arg14[%c1_69, %c0_70, %c0_71], %70 {strides = array<i32>} : memref<10x10x128xf32, #tpu.memory_space<vmem>>, vector<8x1x128xf32>,
    %cst_72 = arith.constant 0.000000e+00 : f32
    %72 = vector.broadcast %cst_72 : f32 to vector<8x1x128xf32>
    %c1_73 = arith.constant 1 : index
    %c9_74 = arith.constant 9 : index
    %c0_75 = arith.constant 0 : index
    %73 = vector.load %arg14[%c1_73, %c9_74, %c0_75] : memref<10x10x128xf32, #tpu.memory_space<vmem>>, vector<8x1x128xf32>
    tpu.vector_store %arg14[%c1_73, %c9_74, %c0_75], %72 {strides = array<i32>} : memref<10x10x128xf32, #tpu.memory_space<vmem>>, vector<8x1x128xf32>,
    %74 = vector.shape_cast %65 : vector<64x128xf32> to vector<8x8x128xf32>
    %c1_76 = arith.constant 1 : index
    %c1_77 = arith.constant 1 : index
    %c0_78 = arith.constant 0 : index
    %75 = vector.load %arg14[%c1_76, %c1_77, %c0_78] : memref<10x10x128xf32, #tpu.memory_space<vmem>>, vector<8x8x128xf32>
    tpu.vector_store %arg14[%c1_76, %c1_77, %c0_78], %74 {strides = array<i32>} : memref<10x10x128xf32, #tpu.memory_space<vmem>>, vector<8x8x128xf32>,
    %c0_79 = arith.constant 0 : index
    %c0_80 = arith.constant 0 : index
    %c0_81 = arith.constant 0 : index
    %76 = vector.load %arg14[%c0_79, %c0_80, %c0_81] : memref<10x10x128xf32, #tpu.memory_space<vmem>>, vector<8x8x128xf32>
    %77 = vector.shape_cast %76 : vector<8x8x128xf32> to vector<64x128xf32>
    %c0_82 = arith.constant 0 : index
    %c0_83 = arith.constant 0 : index
    %78 = vector.load %arg13[%c0_82, %c0_83] : memref<64x1152xf32, #tpu.memory_space<vmem>>, vector<64x128xf32>
    tpu.vector_store %arg13[%c0_82, %c0_83], %77 {strides = array<i32>} : memref<64x1152xf32, #tpu.memory_space<vmem>>, vector<64x128xf32>,
    %c0_84 = arith.constant 0 : index
    %c1_85 = arith.constant 1 : index
    %c0_86 = arith.constant 0 : index
    %79 = vector.load %arg14[%c0_84, %c1_85, %c0_86] : memref<10x10x128xf32, #tpu.memory_space<vmem>>, vector<8x8x128xf32>
    %80 = vector.shape_cast %79 : vector<8x8x128xf32> to vector<64x128xf32>
    %c0_87 = arith.constant 0 : index
    %c128_88 = arith.constant 128 : index
    %81 = vector.load %arg13[%c0_87, %c128_88] : memref<64x1152xf32, #tpu.memory_space<vmem>>, vector<64x128xf32>
    tpu.vector_store %arg13[%c0_87, %c128_88], %80 {strides = array<i32>} : memref<64x1152xf32, #tpu.memory_space<vmem>>, vector<64x128xf32>,
    %c0_89 = arith.constant 0 : index
    %c2_90 = arith.constant 2 : index
    %c0_91 = arith.constant 0 : index
    %82 = vector.load %arg14[%c0_89, %c2_90, %c0_91] : memref<10x10x128xf32, #tpu.memory_space<vmem>>, vector<8x8x128xf32>
    %83 = vector.shape_cast %82 : vector<8x8x128xf32> to vector<64x128xf32>
    %c0_92 = arith.constant 0 : index
    %c256_93 = arith.constant 256 : index
    %84 = vector.load %arg13[%c0_92, %c256_93] : memref<64x1152xf32, #tpu.memory_space<vmem>>, vector<64x128xf32>
    tpu.vector_store %arg13[%c0_92, %c256_93], %83 {strides = array<i32>} : memref<64x1152xf32, #tpu.memory_space<vmem>>, vector<64x128xf32>,
    %c1_94 = arith.constant 1 : index
    %c0_95 = arith.constant 0 : index
    %c0_96 = arith.constant 0 : index
    %85 = vector.load %arg14[%c1_94, %c0_95, %c0_96] : memref<10x10x128xf32, #tpu.memory_space<vmem>>, vector<8x8x128xf32>
    %86 = vector.shape_cast %85 : vector<8x8x128xf32> to vector<64x128xf32>
    %c0_97 = arith.constant 0 : index
    %c384_98 = arith.constant 384 : index
    %87 = vector.load %arg13[%c0_97, %c384_98] : memref<64x1152xf32, #tpu.memory_space<vmem>>, vector<64x128xf32>
    tpu.vector_store %arg13[%c0_97, %c384_98], %86 {strides = array<i32>} : memref<64x1152xf32, #tpu.memory_space<vmem>>, vector<64x128xf32>,
    %c1_99 = arith.constant 1 : index
    %c1_100 = arith.constant 1 : index
    %c0_101 = arith.constant 0 : index
    %88 = vector.load %arg14[%c1_99, %c1_100, %c0_101] : memref<10x10x128xf32, #tpu.memory_space<vmem>>, vector<8x8x128xf32>
    %89 = vector.shape_cast %88 : vector<8x8x128xf32> to vector<64x128xf32>
    %c0_102 = arith.constant 0 : index
    %c512_103 = arith.constant 512 : index
    %90 = vector.load %arg13[%c0_102, %c512_103] : memref<64x1152xf32, #tpu.memory_space<vmem>>, vector<64x128xf32>
    tpu.vector_store %arg13[%c0_102, %c512_103], %89 {strides = array<i32>} : memref<64x1152xf32, #tpu.memory_space<vmem>>, vector<64x128xf32>,
    %c1_104 = arith.constant 1 : index
    %c2_105 = arith.constant 2 : index
    %c0_106 = arith.constant 0 : index
    %91 = vector.load %arg14[%c1_104, %c2_105, %c0_106] : memref<10x10x128xf32, #tpu.memory_space<vmem>>, vector<8x8x128xf32>
    %92 = vector.shape_cast %91 : vector<8x8x128xf32> to vector<64x128xf32>
    %c0_107 = arith.constant 0 : index
    %c640 = arith.constant 640 : index
    %93 = vector.load %arg13[%c0_107, %c640] : memref<64x1152xf32, #tpu.memory_space<vmem>>, vector<64x128xf32>
    tpu.vector_store %arg13[%c0_107, %c640], %92 {strides = array<i32>} : memref<64x1152xf32, #tpu.memory_space<vmem>>, vector<64x128xf32>,
    %c2_108 = arith.constant 2 : index
    %c0_109 = arith.constant 0 : index
    %c0_110 = arith.constant 0 : index
    %94 = vector.load %arg14[%c2_108, %c0_109, %c0_110] : memref<10x10x128xf32, #tpu.memory_space<vmem>>, vector<8x8x128xf32>
    %95 = vector.shape_cast %94 : vector<8x8x128xf32> to vector<64x128xf32>
    %c0_111 = arith.constant 0 : index
    %c768 = arith.constant 768 : index
    %96 = vector.load %arg13[%c0_111, %c768] : memref<64x1152xf32, #tpu.memory_space<vmem>>, vector<64x128xf32>
    tpu.vector_store %arg13[%c0_111, %c768], %95 {strides = array<i32>} : memref<64x1152xf32, #tpu.memory_space<vmem>>, vector<64x128xf32>,
    %c2_112 = arith.constant 2 : index
    %c1_113 = arith.constant 1 : index
    %c0_114 = arith.constant 0 : index
    %97 = vector.load %arg14[%c2_112, %c1_113, %c0_114] : memref<10x10x128xf32, #tpu.memory_space<vmem>>, vector<8x8x128xf32>
    %98 = vector.shape_cast %97 : vector<8x8x128xf32> to vector<64x128xf32>
    %c0_115 = arith.constant 0 : index
    %c896 = arith.constant 896 : index
    %99 = vector.load %arg13[%c0_115, %c896] : memref<64x1152xf32, #tpu.memory_space<vmem>>, vector<64x128xf32>
    tpu.vector_store %arg13[%c0_115, %c896], %98 {strides = array<i32>} : memref<64x1152xf32, #tpu.memory_space<vmem>>, vector<64x128xf32>,
    %c2_116 = arith.constant 2 : index
    %c2_117 = arith.constant 2 : index
    %c0_118 = arith.constant 0 : index
    %100 = vector.load %arg14[%c2_116, %c2_117, %c0_118] : memref<10x10x128xf32, #tpu.memory_space<vmem>>, vector<8x8x128xf32>
    %101 = vector.shape_cast %100 : vector<8x8x128xf32> to vector<64x128xf32>
    %c0_119 = arith.constant 0 : index
    %c1024 = arith.constant 1024 : index
    %102 = vector.load %arg13[%c0_119, %c1024] : memref<64x1152xf32, #tpu.memory_space<vmem>>, vector<64x128xf32>
    tpu.vector_store %arg13[%c0_119, %c1024], %101 {strides = array<i32>} : memref<64x1152xf32, #tpu.memory_space<vmem>>, vector<64x128xf32>,
    %c0_120 = arith.constant 0 : index
    %c0_121 = arith.constant 0 : index
    %103 = vector.load %arg13[%c0_120, %c0_121] : memref<64x1152xf32, #tpu.memory_space<vmem>>, vector<64x1152xf32>
    %c0_122 = arith.constant 0 : index
    %c0_123 = arith.constant 0 : index
    %104 = vector.load %arg6[%c0_122, %c0_123] : memref<1152x128xf32, #tpu.memory_space<vmem>>, vector<1152x128xf32>
    %cst_124 = arith.constant dense<0.000000e+00> : vector<64x128xf32>
    %105 = tpu.matmul %103, %104, %cst_124 {dimension_numbers = #tpu.dot_dimension_numbers<[1], [0], [0], [1], [0, 0, 1, 1], [], []>} : vector<64x1152xf32>, vector<1152x128xf32>, vector<64x128xf32> -> vector<64x128xf32>
    %c0_125 = arith.constant 0 : index
    %c0_126 = arith.constant 0 : index
    %106 = vector.load %arg7[%c0_125, %c0_126] : memref<1x128xf32, #tpu.memory_space<vmem>>, vector<1x128xf32>
    %107 = vector.broadcast %106 : vector<1x128xf32> to vector<64x128xf32>
    %108 = arith.addf %105, %107 : vector<64x128xf32>
    %c0_127 = arith.constant 0 : index
    %c0_128 = arith.constant 0 : index
    %109 = vector.load %arg8[%c0_127, %c0_128] : memref<1x128xf32, #tpu.memory_space<vmem>>, vector<1x128xf32>
    %c0_129 = arith.constant 0 : index
    %c0_130 = arith.constant 0 : index
    %110 = vector.load %arg9[%c0_129, %c0_130] : memref<1x128xf32, #tpu.memory_space<vmem>>, vector<1x128xf32>
    %cst_131 = arith.constant dense<0.000000e+00> : vector<128xf32>
    %111 = vector.multi_reduction <add>, %108, %cst_131 [0] : vector<64x128xf32> to vector<128xf32>
    %112 = vector.shape_cast %111 : vector<128xf32> to vector<1x128xf32>
    %113 = arith.mulf %108, %108 : vector<64x128xf32>
    %cst_132 = arith.constant dense<0.000000e+00> : vector<128xf32>
    %114 = vector.multi_reduction <add>, %113, %cst_132 [0] : vector<64x128xf32> to vector<128xf32>
    %115 = vector.shape_cast %114 : vector<128xf32> to vector<1x128xf32>
    %cst_133 = arith.constant dense<0.000000e+00> : vector<1x128xf32>
    %116 = tpu.matmul %112, %0, %cst_133 {dimension_numbers = #tpu.dot_dimension_numbers<[1], [0], [0], [1], [0, 0, 1, 1], [], []>} : vector<1x128xf32>, vector<128x128xf32>, vector<1x128xf32> -> vector<1x128xf32>
    %cst_134 = arith.constant dense<0.000000e+00> : vector<1x128xf32>
    %117 = tpu.matmul %115, %0, %cst_134 {dimension_numbers = #tpu.dot_dimension_numbers<[1], [0], [0], [1], [0, 0, 1, 1], [], []>} : vector<1x128xf32>, vector<128x128xf32>, vector<1x128xf32> -> vector<1x128xf32>
    %118 = arith.mulf %116, %116 : vector<1x128xf32>
    %119 = arith.subf %117, %118 : vector<1x128xf32>
    %cst_135 = arith.constant 9.99999974E-6 : f32
    %120 = vector.broadcast %cst_135 : f32 to vector<1x128xf32>
    %121 = arith.addf %119, %120 : vector<1x128xf32>
    %122 = math.rsqrt %121 : vector<1x128xf32>
    %123 = arith.mulf %122, %109 : vector<1x128xf32>
    %124 = arith.mulf %116, %123 : vector<1x128xf32>
    %125 = arith.subf %110, %124 : vector<1x128xf32>
    %126 = vector.broadcast %123 : vector<1x128xf32> to vector<64x128xf32>
    %127 = arith.mulf %108, %126 : vector<64x128xf32>
    %128 = vector.broadcast %125 : vector<1x128xf32> to vector<64x128xf32>
    %129 = arith.addf %127, %128 : vector<64x128xf32>
    %cst_136 = arith.constant 0.000000e+00 : f32
    %130 = vector.broadcast %cst_136 : f32 to vector<64x128xf32>
    %131 = arith.maximumf %129, %130 : vector<64x128xf32>
    %c0_137 = arith.constant 0 : index
    %c0_138 = arith.constant 0 : index
    %c0_139 = arith.constant 0 : index
    %132 = vector.load %arg11[%c0_137, %c0_138, %c0_139] : memref<1x64x128xf32, #tpu.memory_space<vmem>>, vector<1x64x128xf32>
    %133 = vector.shape_cast %132 : vector<1x64x128xf32> to vector<64x128xf32>
    %134 = vector.shape_cast %131 : vector<64x128xf32> to vector<1x64x128xf32>
    tpu.vector_store %arg11[%c0_137, %c0_138, %c0_139], %134 {strides = array<i32>} : memref<1x64x128xf32, #tpu.memory_space<vmem>>, vector<1x64x128xf32>,
    return
  }
  func.func @transform_0(%arg0: i32) -> (i32, i32, i32, i32) {
    %c0_i32 = arith.constant 0 : i32
    %c0_i32_0 = arith.constant 0 : i32
    %c0_i32_1 = arith.constant 0 : i32
    %c0_i32_2 = arith.constant 0 : i32
    return %arg0, %c0_i32, %c0_i32_0, %c0_i32_1 : i32, i32, i32, i32
  }
  func.func @transform_1(%arg0: i32) -> (i32, i32) {
    %c0_i32 = arith.constant 0 : i32
    %c0_i32_0 = arith.constant 0 : i32
    %c0_i32_1 = arith.constant 0 : i32
    return %c0_i32, %c0_i32_0 : i32, i32
  }
  func.func @transform_2(%arg0: i32) -> (i32, i32) {
    %c0_i32 = arith.constant 0 : i32
    %c0_i32_0 = arith.constant 0 : i32
    %c0_i32_1 = arith.constant 0 : i32
    return %c0_i32, %c0_i32_0 : i32, i32
  }
  func.func @transform_3(%arg0: i32) -> (i32, i32) {
    %c0_i32 = arith.constant 0 : i32
    %c0_i32_0 = arith.constant 0 : i32
    %c0_i32_1 = arith.constant 0 : i32
    return %c0_i32, %c0_i32_0 : i32, i32
  }
  func.func @transform_4(%arg0: i32) -> (i32, i32) {
    %c0_i32 = arith.constant 0 : i32
    %c0_i32_0 = arith.constant 0 : i32
    %c0_i32_1 = arith.constant 0 : i32
    return %c0_i32, %c0_i32_0 : i32, i32
  }
  func.func @transform_5(%arg0: i32) -> (i32, i32) {
    %c0_i32 = arith.constant 0 : i32
    %c0_i32_0 = arith.constant 0 : i32
    %c0_i32_1 = arith.constant 0 : i32
    return %c0_i32, %c0_i32_0 : i32, i32
  }
  func.func @transform_6(%arg0: i32) -> (i32, i32) {
    %c0_i32 = arith.constant 0 : i32
    %c0_i32_0 = arith.constant 0 : i32
    %c0_i32_1 = arith.constant 0 : i32
    return %c0_i32, %c0_i32_0 : i32, i32
  }
  func.func @transform_7(%arg0: i32) -> (i32, i32) {
    %c0_i32 = arith.constant 0 : i32
    %c0_i32_0 = arith.constant 0 : i32
    %c0_i32_1 = arith.constant 0 : i32
    return %c0_i32, %c0_i32_0 : i32, i32
  }
  func.func @transform_8(%arg0: i32) -> (i32, i32) {
    %c0_i32 = arith.constant 0 : i32
    %c0_i32_0 = arith.constant 0 : i32
    %c0_i32_1 = arith.constant 0 : i32
    return %c0_i32, %c0_i32_0 : i32, i32
  }
  func.func @transform_9(%arg0: i32) -> (i32, i32) {
    %c0_i32 = arith.constant 0 : i32
    %c0_i32_0 = arith.constant 0 : i32
    %c0_i32_1 = arith.constant 0 : i32
    return %c0_i32, %c0_i32_0 : i32, i32
  }
  func.func @transform_10(%arg0: i32) -> (i32, i32, i32) {
    %c0_i32 = arith.constant 0 : i32
    %c0_i32_0 = arith.constant 0 : i32
    %c0_i32_1 = arith.constant 0 : i32
    return %arg0, %c0_i32, %c0_i32_0 : i32, i32, i32
  }
}

</mosaic_0001>

<llo_original>
// kernel: tpu_custom_call.1
$region0: #{tpu_custom_call.1}
  #allocation0 [shape = 'u32[]', space=smem, size = 0x4, offset = 0x4, fixed_abs, tag = 'smem constant byte address 0x4 - core index']
  #allocation1 [shape = 'u32[72,128]{1,0:T(1,128)}', space=vmem, size = 0x9000, scoped, tag = 'internal scratch']
  #allocation2 [shape = 'f32[64,576]{1,0:T(8,128)}', space=vmem, size = 0x28000, scoped, tag = 'scratch operand']
  #allocation3 [shape = 'f32[64,1152]{1,0:T(8,128)}', space=vmem, size = 0x48000, scoped, tag = 'scratch operand']
  #allocation4 [shape = 'f32[10,10,128]{2,1,0:T(8,128)}', space=vmem, size = 0x14000, scoped, tag = 'scratch operand']
  %s0 = inlined_call_operand.vmem [shape: f32[2,10,10,64], index: 0, kind: input, shape index: {}]
  %s1 = inlined_call_operand.hbm [shape: f32[576,128], index: 1, kind: input, shape index: {}]
  %s2 = inlined_call_operand.vmem [shape: f32[1,128], index: 2, kind: input, shape index: {}]
  %s3 = inlined_call_operand.vmem [shape: f32[1,128], index: 3, kind: input, shape index: {}]
  %s4 = inlined_call_operand.vmem [shape: f32[1,128], index: 4, kind: input, shape index: {}]
  %s5 = inlined_call_operand.hbm [shape: f32[1152,128], index: 5, kind: input, shape index: {}]
  %s6 = inlined_call_operand.vmem [shape: f32[1,128], index: 6, kind: input, shape index: {}]
  %s7 = inlined_call_operand.vmem [shape: f32[1,128], index: 7, kind: input, shape index: {}]
  %s8 = inlined_call_operand.vmem [shape: f32[1,128], index: 8, kind: input, shape index: {}]
  %s9 = inlined_call_operand.vmem [shape: f32[128,128], index: 9, kind: input, shape index: {}]
  %s10 = inlined_call_operand.hbm [shape: f32[2,64,128], index: 10, kind: output, shape index: {}]
  %s11 = sld [smem:[#allocation0]]
  $region81: #{tpu_custom_call.1} parent=0
    _
  %s13 = ssub.s32 1, %s11
  %s14 = scalar_select 0, %s13, %s11
  $region1: #{tpu_custom_call.1} parent=0
    #allocation5 [shape = 'u8[294912]{0}', space=vmem, size = 0x48000, scoped, tag = 'input window, operand 1, single buffered']
    #allocation6 [shape = 's32[2]{0}', space=sflag, size = 0x8, scoped, tag = 'scoped memory for tpu_custom_call.1']
    #allocation7 [shape = 's32[2]{0}', space=sflag, size = 0x8, scoped, tag = 'scoped memory for tpu_custom_call.1']
    #allocation8 [shape = 'u8[589824]{0}', space=vmem, size = 0x90000, scoped, tag = 'input window, operand 5, single buffered']
    #allocation9 [shape = 's32[1]{0}', space=sflag, size = 0x4, scoped, tag = 'scoped memory for tpu_custom_call.1']
    #allocation10 [shape = 'u8[65536]{0}', space=vmem, size = 0x10000, scoped, tag = 'output window, operand 0']
    %15 = vsyncpa [#allocation6], 0
    %16 = vsyncpa [#allocation9], 0
    %17 = vsyncpa [#allocation7], 0
    %s18 = scalar_lea.sflag [#allocation7], 1
    %19 = vsyncpa %s18, 0
    loop: start=0, step=1, limit=4
    $region2: #{tpu_custom_call.1} parent=1 // loop_pre_header
      _
    $region3: #{tpu_custom_call.1} parent=1 // loop_header
      %s21 = sphi 0, %s25
      %p22 = scmp.ge.s32.totalorder %s21, 4
      %s31 = sphi 0, %s33
      %s34 = sphi 0, %s31
      %s35 = sphi 0, %s34
      %s51 = sphi 0, %s35
      %s55 = sphi 0, %s55
      %s57 = sphi 0, %s55
      %s58 = sphi 0, %s57
      %s72 = sphi 0, %s58
      %s76 = sphi 0, %s76
      %s78 = sphi 0, %s76
      %s79 = sphi 0, %s78
      %s93 = sphi 0, %s79
      %s97 = sphi 0, %s97
      %s99 = sphi 0, %s97
      %s100 = sphi 0, %s99
      %s114 = sphi 0, %s100
      %s118 = sphi 0, %s118
      %s120 = sphi 0, %s118
      %s121 = sphi 0, %s120
      %s135 = sphi 0, %s121
      %s139 = sphi 0, %s139
      %s141 = sphi 0, %s139
      %s142 = sphi 0, %s141
      %s156 = sphi 0, %s142
      %s160 = sphi 0, %s160
      %s162 = sphi 0, %s160
      %s163 = sphi 0, %s162
      %s177 = sphi 0, %s163
      %s181 = sphi 0, %s181
      %s183 = sphi 0, %s181
      %s184 = sphi 0, %s183
      %s198 = sphi 0, %s184
      %s202 = sphi 0, %s202
      %s204 = sphi 0, %s202
      %s205 = sphi 0, %s204
      %s219 = sphi 0, %s205
      %s223 = sphi 0, %s223
      %s225 = sphi 0, %s223
      %s226 = sphi 0, %s225
      %s240 = sphi 0, %s226
      %s246 = sphi 0, %s248
      %s249 = sphi 0, %s246
      %s250 = sphi 0, %s249
      %s266 = sphi 0, %s250
    $region4: #{tpu_custom_call.1} parent=1 // loop_header_branch
      %24 = sbr.rel (%p22) target = $region8
    $region5: #{tpu_custom_call.1} parent=1 // loop_body
      %s26 = ssub.s32 %s21, 1
      %s27 = ssub.s32 %s21, 2
      %s28 = sadd.s32 %s21, 1
      %s29 = ssub.s32 %s21, %s28
      %p30 = scmp.eq.s32.totalorder %s29, 0
      %s32 = sadd.s32 %s31, 1
      %s33 = scalar_select %p30, %s31, %s32
      %p36 = pneg %p30
      %p37 = scmp.eq.s32.totalorder %s21, 1
      %p38 = por %p36, %p37
      %p39 = scmp.ne.s32.totalorder %s31, %s34
      %p40 = scmp.eq.s32.totalorder %s21, 0
      %p41 = por %p39, %p40
      %p42 = scmp.ne.s32.totalorder %s31, %s34
      %p43 = scmp.eq.s32.totalorder %s26, 1
      %p44 = por %p42, %p43
      %p45 = scmp.ne.s32.totalorder %s34, %s35
      %p46 = scmp.eq.s32.totalorder %s26, 0
      %p47 = por %p45, %p46
      %p48 = scmp.ne.s32.totalorder %s34, %s35
      %p49 = scmp.eq.s32.totalorder %s27, 1
      %p50 = por %p48, %p49
      %p52 = scmp.ne.s32.totalorder %s35, %s51
      %p53 = scmp.eq.s32.totalorder %s27, 0
      %p54 = por %p52, %p53
      %s56 = sadd.s32 %s55, 1
      %p59 = scmp.eq.s32.totalorder %s21, 1
      %p60 = scmp.ne.s32.totalorder %s55, %s57
      %p61 = scmp.eq.s32.totalorder %s21, 0
      %p62 = por %p60, %p61
      %p63 = scmp.ne.s32.totalorder %s55, %s57
      %p64 = scmp.eq.s32.totalorder %s26, 1
      %p65 = por %p63, %p64
      %p66 = scmp.ne.s32.totalorder %s57, %s58
      %p67 = scmp.eq.s32.totalorder %s26, 0
      %p68 = por %p66, %p67
      %p69 = scmp.ne.s32.totalorder %s57, %s58
      %p70 = scmp.eq.s32.totalorder %s27, 1
      %p71 = por %p69, %p70
      %p73 = scmp.ne.s32.totalorder %s58, %s72
      %p74 = scmp.eq.s32.totalorder %s27, 0
      %p75 = por %p73, %p74
      %s77 = sadd.s32 %s76, 1
      %p80 = scmp.eq.s32.totalorder %s21, 1
      %p81 = scmp.ne.s32.totalorder %s76, %s78
      %p82 = scmp.eq.s32.totalorder %s21, 0
      %p83 = por %p81, %p82
      %p84 = scmp.ne.s32.totalorder %s76, %s78
      %p85 = scmp.eq.s32.totalorder %s26, 1
      %p86 = por %p84, %p85
      %p87 = scmp.ne.s32.totalorder %s78, %s79
      %p88 = scmp.eq.s32.totalorder %s26, 0
      %p89 = por %p87, %p88
      %p90 = scmp.ne.s32.totalorder %s78, %s79
      %p91 = scmp.eq.s32.totalorder %s27, 1
      %p92 = por %p90, %p91
      %p94 = scmp.ne.s32.totalorder %s79, %s93
      %p95 = scmp.eq.s32.totalorder %s27, 0
      %p96 = por %p94, %p95
      %s98 = sadd.s32 %s97, 1
      %p101 = scmp.eq.s32.totalorder %s21, 1
      %p102 = scmp.ne.s32.totalorder %s97, %s99
      %p103 = scmp.eq.s32.totalorder %s21, 0
      %p104 = por %p102, %p103
      %p105 = scmp.ne.s32.totalorder %s97, %s99
      %p106 = scmp.eq.s32.totalorder %s26, 1
      %p107 = por %p105, %p106
      %p108 = scmp.ne.s32.totalorder %s99, %s100
      %p109 = scmp.eq.s32.totalorder %s26, 0
      %p110 = por %p108, %p109
      %p111 = scmp.ne.s32.totalorder %s99, %s100
      %p112 = scmp.eq.s32.totalorder %s27, 1
      %p113 = por %p111, %p112
      %p115 = scmp.ne.s32.totalorder %s100, %s114
      %p116 = scmp.eq.s32.totalorder %s27, 0
      %p117 = por %p115, %p116
      %s119 = sadd.s32 %s118, 1
      %p122 = scmp.eq.s32.totalorder %s21, 1
      %p123 = scmp.ne.s32.totalorder %s118, %s120
      %p124 = scmp.eq.s32.totalorder %s21, 0
      %p125 = por %p123, %p124
      %p126 = scmp.ne.s32.totalorder %s118, %s120
      %p127 = scmp.eq.s32.totalorder %s26, 1
      %p128 = por %p126, %p127
      %p129 = scmp.ne.s32.totalorder %s120, %s121
      %p130 = scmp.eq.s32.totalorder %s26, 0
      %p131 = por %p129, %p130
      %p132 = scmp.ne.s32.totalorder %s120, %s121
      %p133 = scmp.eq.s32.totalorder %s27, 1
      %p134 = por %p132, %p133
      %p136 = scmp.ne.s32.totalorder %s121, %s135
      %p137 = scmp.eq.s32.totalorder %s27, 0
      %p138 = por %p136, %p137
      %s140 = sadd.s32 %s139, 1
      %p143 = scmp.eq.s32.totalorder %s21, 1
      %p144 = scmp.ne.s32.totalorder %s139, %s141
      %p145 = scmp.eq.s32.totalorder %s21, 0
      %p146 = por %p144, %p145
      %p147 = scmp.ne.s32.totalorder %s139, %s141
      %p148 = scmp.eq.s32.totalorder %s26, 1
      %p149 = por %p147, %p148
      %p150 = scmp.ne.s32.totalorder %s141, %s142
      %p151 = scmp.eq.s32.totalorder %s26, 0
      %p152 = por %p150, %p151
      %p153 = scmp.ne.s32.totalorder %s141, %s142
      %p154 = scmp.eq.s32.totalorder %s27, 1
      %p155 = por %p153, %p154
      %p157 = scmp.ne.s32.totalorder %s142, %s156
      %p158 = scmp.eq.s32.totalorder %s27, 0
      %p159 = por %p157, %p158
      %s161 = sadd.s32 %s160, 1
      %p164 = scmp.eq.s32.totalorder %s21, 1
      %p165 = scmp.ne.s32.totalorder %s160, %s162
      %p166 = scmp.eq.s32.totalorder %s21, 0
      %p167 = por %p165, %p166
      %p168 = scmp.ne.s32.totalorder %s160, %s162
      %p169 = scmp.eq.s32.totalorder %s26, 1
      %p170 = por %p168, %p169
      %p171 = scmp.ne.s32.totalorder %s162, %s163
      %p172 = scmp.eq.s32.totalorder %s26, 0
      %p173 = por %p171, %p172
      %p174 = scmp.ne.s32.totalorder %s162, %s163
      %p175 = scmp.eq.s32.totalorder %s27, 1
      %p176 = por %p174, %p175
      %p178 = scmp.ne.s32.totalorder %s163, %s177
      %p179 = scmp.eq.s32.totalorder %s27, 0
      %p180 = por %p178, %p179
      %s182 = sadd.s32 %s181, 1
      %p185 = scmp.eq.s32.totalorder %s21, 1
      %p186 = scmp.ne.s32.totalorder %s181, %s183
      %p187 = scmp.eq.s32.totalorder %s21, 0
      %p188 = por %p186, %p187
      %p189 = scmp.ne.s32.totalorder %s181, %s183
      %p190 = scmp.eq.s32.totalorder %s26, 1
      %p191 = por %p189, %p190
      %p192 = scmp.ne.s32.totalorder %s183, %s184
      %p193 = scmp.eq.s32.totalorder %s26, 0
      %p194 = por %p192, %p193
      %p195 = scmp.ne.s32.totalorder %s183, %s184
      %p196 = scmp.eq.s32.totalorder %s27, 1
      %p197 = por %p195, %p196
      %p199 = scmp.ne.s32.totalorder %s184, %s198
      %p200 = scmp.eq.s32.totalorder %s27, 0
      %p201 = por %p199, %p200
      %s203 = sadd.s32 %s202, 1
      %p206 = scmp.eq.s32.totalorder %s21, 1
      %p207 = scmp.ne.s32.totalorder %s202, %s204
      %p208 = scmp.eq.s32.totalorder %s21, 0
      %p209 = por %p207, %p208
      %p210 = scmp.ne.s32.totalorder %s202, %s204
      %p211 = scmp.eq.s32.totalorder %s26, 1
      %p212 = por %p210, %p211
      %p213 = scmp.ne.s32.totalorder %s204, %s205
      %p214 = scmp.eq.s32.totalorder %s26, 0
      %p215 = por %p213, %p214
      %p216 = scmp.ne.s32.totalorder %s204, %s205
      %p217 = scmp.eq.s32.totalorder %s27, 1
      %p218 = por %p216, %p217
      %p220 = scmp.ne.s32.totalorder %s205, %s219
      %p221 = scmp.eq.s32.totalorder %s27, 0
      %p222 = por %p220, %p221
      %s224 = sadd.s32 %s223, 1
      %p227 = scmp.eq.s32.totalorder %s21, 1
      %p228 = scmp.ne.s32.totalorder %s223, %s225
      %p229 = scmp.eq.s32.totalorder %s21, 0
      %p230 = por %p228, %p229
      %p231 = scmp.ne.s32.totalorder %s223, %s225
      %p232 = scmp.eq.s32.totalorder %s26, 1
      %p233 = por %p231, %p232
      %p234 = scmp.ne.s32.totalorder %s225, %s226
      %p235 = scmp.eq.s32.totalorder %s26, 0
      %p236 = por %p234, %p235
      %p237 = scmp.ne.s32.totalorder %s225, %s226
      %p238 = scmp.eq.s32.totalorder %s27, 1
      %p239 = por %p237, %p238
      %p241 = scmp.ne.s32.totalorder %s226, %s240
      %p242 = scmp.eq.s32.totalorder %s27, 0
      %p243 = por %p241, %p242
      %s244 = ssub.s32 %s21, %s28
      %p245 = scmp.eq.s32.totalorder %s244, 0
      %s247 = sadd.s32 %s246, 1
      %s248 = scalar_select %p245, %s246, %s247
      %p251 = pneg %p245
      %p252 = scmp.eq.s32.totalorder %s21, 1
      %p253 = por %p251, %p252
      %p254 = scmp.ne.s32.totalorder %s246, %s249
      %p255 = scmp.eq.s32.totalorder %s21, 0
      %p256 = por %p254, %p255
      %p257 = scmp.ne.s32.totalorder %s246, %s249
      %p258 = scmp.eq.s32.totalorder %s26, 1
      %p259 = por %p257, %p258
      %p260 = scmp.ne.s32.totalorder %s249, %s250
      %p261 = scmp.eq.s32.totalorder %s26, 0
      %p262 = por %p260, %p261
      %p263 = scmp.ne.s32.totalorder %s249, %s250
      %p264 = scmp.eq.s32.totalorder %s27, 1
      %p265 = por %p263, %p264
      %p267 = scmp.ne.s32.totalorder %s250, %s266
      %p268 = scmp.eq.s32.totalorder %s27, 0
      %p269 = por %p267, %p268
      %p270 = scmp.le.s32.totalorder 1, %s21
      %p271 = scmp.lt.s32.totalorder %s21, 3
      %p272 = pnand %p270, %p271
      %p273 = pneg %p272
      // Predicated region
      $region9: #{tpu_custom_call.1} parent=5 // pred_check
        _
      $region10: #{tpu_custom_call.1} parent=5 // pred_check_branch
        %275 = sbr.rel (%p272) target = $region12
      $region11: #{tpu_custom_call.1} parent=5 // pred_region
        %s276 = ssub.s32 %s21, 1
        // Predicated region
        $region13: #{tpu_custom_call.1} parent=11 // pred_check
          %p277 = pneg %p68
        $region14: #{tpu_custom_call.1} parent=11 // pred_check_branch
          %279 = sbr.rel (%p277) target = $region16
        $region15: #{tpu_custom_call.1} parent=11 // pred_region
          %281 = vsyncadd [#allocation6], 0
          %s282 = sshll.u32 %s1, 4
          %s283 = int_to_ptr.hbm [resolvable:$true] %s282
          %s284 = sshll.u32 [#allocation5], 4
          %s285 = int_to_ptr.vmem [resolvable:$true] %s284
          %290 = dma.hbm_to_vmem [thread:$0]  %s283, 9216, %s285, [#allocation6], 128, 128, 8
        $region16: #{tpu_custom_call.1} parent=11 // pred_fallthru
          _
        // Predicated region
        $region17: #{tpu_custom_call.1} parent=11 // pred_check
          %p291 = pneg %p89
        $region18: #{tpu_custom_call.1} parent=11 // pred_check_branch
          %293 = sbr.rel (%p291) target = $region20
        $region19: #{tpu_custom_call.1} parent=11 // pred_region
          _
        $region20: #{tpu_custom_call.1} parent=11 // pred_fallthru
          _
        // Predicated region
        $region21: #{tpu_custom_call.1} parent=11 // pred_check
          %p294 = pneg %p110
        $region22: #{tpu_custom_call.1} parent=11 // pred_check_branch
          %296 = sbr.rel (%p294) target = $region24
        $region23: #{tpu_custom_call.1} parent=11 // pred_region
          _
        $region24: #{tpu_custom_call.1} parent=11 // pred_fallthru
          _
        // Predicated region
        $region25: #{tpu_custom_call.1} parent=11 // pred_check
          %p297 = pneg %p131
        $region26: #{tpu_custom_call.1} parent=11 // pred_check_branch
          %299 = sbr.rel (%p297) target = $region28
        $region27: #{tpu_custom_call.1} parent=11 // pred_region
          _
        $region28: #{tpu_custom_call.1} parent=11 // pred_fallthru
          _
        // Predicated region
        $region29: #{tpu_custom_call.1} parent=11 // pred_check
          %p300 = pneg %p152
        $region30: #{tpu_custom_call.1} parent=11 // pred_check_branch
          %302 = sbr.rel (%p300) target = $region32
        $region31: #{tpu_custom_call.1} parent=11 // pred_region
          %304 = vsyncadd [#allocation9], 0
          %s305 = sshll.u32 %s5, 4
          %s306 = int_to_ptr.hbm [resolvable:$true] %s305
          %s307 = sshll.u32 [#allocation8], 4
          %s308 = int_to_ptr.vmem [resolvable:$true] %s307
          %313 = dma.hbm_to_vmem [thread:$0]  %s306, 18432, %s308, [#allocation9], 128, 128, 8
        $region32: #{tpu_custom_call.1} parent=11 // pred_fallthru
          _
        // Predicated region
        $region33: #{tpu_custom_call.1} parent=11 // pred_check
          %p314 = pneg %p173
        $region34: #{tpu_custom_call.1} parent=11 // pred_check_branch
          %316 = sbr.rel (%p314) target = $region36
        $region35: #{tpu_custom_call.1} parent=11 // pred_region
          _
        $region36: #{tpu_custom_call.1} parent=11 // pred_fallthru
          _
        // Predicated region
        $region37: #{tpu_custom_call.1} parent=11 // pred_check
          %p317 = pneg %p194
        $region38: #{tpu_custom_call.1} parent=11 // pred_check_branch
          %319 = sbr.rel (%p317) target = $region40
        $region39: #{tpu_custom_call.1} parent=11 // pred_region
          _
        $region40: #{tpu_custom_call.1} parent=11 // pred_fallthru
          _
        // Predicated region
        $region41: #{tpu_custom_call.1} parent=11 // pred_check
          %p320 = pneg %p215
        $region42: #{tpu_custom_call.1} parent=11 // pred_check_branch
          %322 = sbr.rel (%p320) target = $region44
        $region43: #{tpu_custom_call.1} parent=11 // pred_region
          _
        $region44: #{tpu_custom_call.1} parent=11 // pred_fallthru
          _
        // Predicated region
        $region45: #{tpu_custom_call.1} parent=11 // pred_check
          %p323 = pneg %p236
        $region46: #{tpu_custom_call.1} parent=11 // pred_check_branch
          %325 = sbr.rel (%p323) target = $region48
        $region47: #{tpu_custom_call.1} parent=11 // pred_region
          _
        $region48: #{tpu_custom_call.1} parent=11 // pred_fallthru
          _
      $region12: #{tpu_custom_call.1} parent=5 // pred_fallthru
        _
      %p326 = scmp.lt.s32.totalorder %s21, 2
      // Predicated region
      $region49: #{tpu_custom_call.1} parent=5 // pred_check
        %p327 = pneg %p326
      $region50: #{tpu_custom_call.1} parent=5 // pred_check_branch
        %329 = sbr.rel (%p327) target = $region52
      $region51: #{tpu_custom_call.1} parent=5 // pred_region
        // Predicated region
        $region53: #{tpu_custom_call.1} parent=51 // pred_check
          %p330 = pneg %p41
        $region54: #{tpu_custom_call.1} parent=51 // pred_check_branch
          %332 = sbr.rel (%p330) target = $region56
        $region55: #{tpu_custom_call.1} parent=51 // pred_region
          %p333 = scmp.lt.s32.totalorder %s21, 1
          %s334 = scalar_select %p333, %s21, 1
          %s335 = smul.addr %s334, 20
          %s336 = smul.addr %s335, 8
          %s337 = scalar_lea.vmem %s0, %s336
        $region56: #{tpu_custom_call.1} parent=51 // pred_fallthru
          _
      $region52: #{tpu_custom_call.1} parent=5 // pred_fallthru
        _
      %p338 = scmp.le.s32.totalorder 1, %s21
      %p339 = scmp.lt.s32.totalorder %s21, 3
      %p340 = pnand %p338, %p339
      %p341 = pneg %p340
      // Predicated region
      $region57: #{tpu_custom_call.1} parent=5 // pred_check
        _
      $region58: #{tpu_custom_call.1} parent=5 // pred_check_branch
        %343 = sbr.rel (%p340) target = $region60
      $region59: #{tpu_custom_call.1} parent=5 // pred_region
        %s344 = ssub.s32 %s21, 1
        // Predicated region
        $region61: #{tpu_custom_call.1} parent=59 // pred_check
          %p345 = pneg %p68
        $region62: #{tpu_custom_call.1} parent=59 // pred_check_branch
          %347 = sbr.rel (%p345) target = $region64
        $region63: #{tpu_custom_call.1} parent=59 // pred_region
          %349 = dma.done [#allocation6], 9216
        $region64: #{tpu_custom_call.1} parent=59 // pred_fallthru
          _
        // Predicated region
        $region65: #{tpu_custom_call.1} parent=59 // pred_check
          %p350 = pneg %p152
        $region66: #{tpu_custom_call.1} parent=59 // pred_check_branch
          %352 = sbr.rel (%p350) target = $region68
        $region67: #{tpu_custom_call.1} parent=59 // pred_region
          %354 = dma.done [#allocation9], 18432
        $region68: #{tpu_custom_call.1} parent=59 // pred_fallthru
          _
        %p355 = scmp.lt.s32.totalorder %s26, 1
        %s356 = scalar_select %p355, %s26, 1
        %s357 = smul.addr %s356, 20
        %s358 = smul.addr %s357, 8
        %s359 = scalar_lea.vmem %s0, %s358
        %p360 = pneg %p47
        %p361 = pneg %p44
        %p362 = pneg %p68
        %p363 = pneg %p65
        %p364 = pneg %p89
        %p365 = pneg %p86
        %p366 = pneg %p110
        %p367 = pneg %p107
        %p368 = pneg %p131
        %p369 = pneg %p128
        %p370 = pneg %p152
        %p371 = pneg %p149
        %p372 = pneg %p173
        %p373 = pneg %p170
        %p374 = pneg %p194
        %p375 = pneg %p191
        %p376 = pneg %p215
        %p377 = pneg %p212
        %p378 = pneg %p236
        %p379 = pneg %p233
        %p380 = pneg %p262
        %p381 = pneg %p259
        %s382 = sand.u32 %s249, 1
        %s383 = scalar_lea.sflag [#allocation7], %s382
        %s384 = sand.u32 %s249, 1
        %s385 = smul.addr %s384, 64
        %s386 = scalar_lea.vmem [#allocation10], %s385
        %p387 = scmp.lt.s32.totalorder %s26, 1
        %s388 = scalar_select %p387, %s26, 1
        %s389 = smul.addr %s388, 20
        %s390 = smul.addr %s389, 8
        %s391 = scalar_lea.vmem %s0, %s390
        %v392 = vld [vmem:[%s9] sm:$0xff]
        %v393 = vld [vmem:[%s9 + $0x8] sm:$0xff]
        %v394 = vld [vmem:[%s9 + $0x10] sm:$0xff]
        %v395 = vld [vmem:[%s9 + $0x18] sm:$0xff]
        %v396 = vld [vmem:[%s9 + $0x20] sm:$0xff]
        %v397 = vld [vmem:[%s9 + $0x28] sm:$0xff]
        %v398 = vld [vmem:[%s9 + $0x30] sm:$0xff]
        %v399 = vld [vmem:[%s9 + $0x38] sm:$0xff]
        %v400 = vld [vmem:[%s9 + $0x40] sm:$0xff]
        %v401 = vld [vmem:[%s9 + $0x48] sm:$0xff]
        %v402 = vld [vmem:[%s9 + $0x50] sm:$0xff]
        %v403 = vld [vmem:[%s9 + $0x58] sm:$0xff]
        %v404 = vld [vmem:[%s9 + $0x60] sm:$0xff]
        %v405 = vld [vmem:[%s9 + $0x68] sm:$0xff]
        %v406 = vld [vmem:[%s9 + $0x70] sm:$0xff]
        %v407 = vld [vmem:[%s9 + $0x78] sm:$0xff]
        %v408 = vld [vmem:[%s391] sm:$0xff]
        %v409 = vld [vmem:[%s391 + $0x10] sm:$0xff]
        %v410 = vld [vmem:[%s391 + $0x20] sm:$0xff]
        %v411 = vld [vmem:[%s391 + $0x30] sm:$0xff]
        %v412 = vld [vmem:[%s391 + $0x40] sm:$0xff]
        %v413 = vld [vmem:[%s391 + $0x50] sm:$0xff]
        %v414 = vld [vmem:[%s391 + $0x60] sm:$0xff]
        %v415 = vld [vmem:[%s391 + $0x70] sm:$0xff]
        %vm416 = vcmask 523264
        %417 = vst.msk [vmem:[#allocation2] sm:$0xff] %vm416, %v408
        %418 = vst.msk [vmem:[#allocation2 + $0x28] sm:$0xff] %vm416, %v409
        %419 = vst.msk [vmem:[#allocation2 + $0x50] sm:$0xff] %vm416, %v410
        %420 = vst.msk [vmem:[#allocation2 + $0x78] sm:$0xff] %vm416, %v411
        %421 = vst.msk [vmem:[#allocation2 + $0xa0] sm:$0xff] %vm416, %v412
        %422 = vst.msk [vmem:[#allocation2 + $0xc8] sm:$0xff] %vm416, %v413
        %423 = vst.msk [vmem:[#allocation2 + $0xf0] sm:$0xff] %vm416, %v414
        %424 = vst.msk [vmem:[#allocation2 + $0x118] sm:$0xff] %vm416, %v415
        %v425 = vld [vmem:[%s391 + $0x1] sm:$0xff]
        %v426 = vld [vmem:[%s391 + $0x11] sm:$0xff]
        %v427 = vld [vmem:[%s391 + $0x21] sm:$0xff]
        %v428 = vld [vmem:[%s391 + $0x31] sm:$0xff]
        %v429 = vld [vmem:[%s391 + $0x41] sm:$0xff]
        %v430 = vld [vmem:[%s391 + $0x51] sm:$0xff]
        %v431 = vld [vmem:[%s391 + $0x61] sm:$0xff]
        %v432 = vld [vmem:[%s391 + $0x71] sm:$0xff]
        %441 = vrot.lane.b32.xlu0 %v425, 64
        %v442 = vpop.permute.xlu0 %441
        %443 = vrot.lane.b32.xlu0 %v426, 64
        %v444 = vpop.permute.xlu0 %443
        %445 = vrot.lane.b32.xlu0 %v427, 64
        %v446 = vpop.permute.xlu0 %445
        %447 = vrot.lane.b32.xlu0 %v428, 64
        %v448 = vpop.permute.xlu0 %447
        %449 = vrot.lane.b32.xlu0 %v429, 64
        %v450 = vpop.permute.xlu0 %449
        %451 = vrot.lane.b32.xlu0 %v430, 64
        %v452 = vpop.permute.xlu0 %451
        %453 = vrot.lane.b32.xlu0 %v431, 64
        %v454 = vpop.permute.xlu0 %453
        %455 = vrot.lane.b32.xlu0 %v432, 64
        %v456 = vpop.permute.xlu0 %455
        %vm465 = vcmask 1048064
        %466 = vst.msk [vmem:[#allocation2] sm:$0xff] %vm465, %v442
        %467 = vst.msk [vmem:[#allocation2 + $0x28] sm:$0xff] %vm465, %v444
        %468 = vst.msk [vmem:[#allocation2 + $0x50] sm:$0xff] %vm465, %v446
        %469 = vst.msk [vmem:[#allocation2 + $0x78] sm:$0xff] %vm465, %v448
        %470 = vst.msk [vmem:[#allocation2 + $0xa0] sm:$0xff] %vm465, %v450
        %471 = vst.msk [vmem:[#allocation2 + $0xc8] sm:$0xff] %vm465, %v452
        %472 = vst.msk [vmem:[#allocation2 + $0xf0] sm:$0xff] %vm465, %v454
        %473 = vst.msk [vmem:[#allocation2 + $0x118] sm:$0xff] %vm465, %v456
        %v474 = vld [vmem:[%s391 + $0x2] sm:$0xff]
        %v475 = vld [vmem:[%s391 + $0x12] sm:$0xff]
        %v476 = vld [vmem:[%s391 + $0x22] sm:$0xff]
        %v477 = vld [vmem:[%s391 + $0x32] sm:$0xff]
        %v478 = vld [vmem:[%s391 + $0x42] sm:$0xff]
        %v479 = vld [vmem:[%s391 + $0x52] sm:$0xff]
        %v480 = vld [vmem:[%s391 + $0x62] sm:$0xff]
        %v481 = vld [vmem:[%s391 + $0x72] sm:$0xff]
        %482 = vst.msk [vmem:[#allocation2 + $0x8] sm:$0xff] %vm416, %v474
        %483 = vst.msk [vmem:[#allocation2 + $0x30] sm:$0xff] %vm416, %v475
        %484 = vst.msk [vmem:[#allocation2 + $0x58] sm:$0xff] %vm416, %v476
        %485 = vst.msk [vmem:[#allocation2 + $0x80] sm:$0xff] %vm416, %v477
        %486 = vst.msk [vmem:[#allocation2 + $0xa8] sm:$0xff] %vm416, %v478
        %487 = vst.msk [vmem:[#allocation2 + $0xd0] sm:$0xff] %vm416, %v479
        %488 = vst.msk [vmem:[#allocation2 + $0xf8] sm:$0xff] %vm416, %v480
        %489 = vst.msk [vmem:[#allocation2 + $0x120] sm:$0xff] %vm416, %v481
        %s490 = scalar_lea.vmem %s391, 16
        %v491 = vld [vmem:[%s490] sm:$0xff]
        %v492 = vld [vmem:[%s490 + $0x10] sm:$0xff]
        %v493 = vld [vmem:[%s490 + $0x20] sm:$0xff]
        %v494 = vld [vmem:[%s490 + $0x30] sm:$0xff]
        %v495 = vld [vmem:[%s490 + $0x40] sm:$0xff]
        %v496 = vld [vmem:[%s490 + $0x50] sm:$0xff]
        %v497 = vld [vmem:[%s490 + $0x60] sm:$0xff]
        %v498 = vld [vmem:[%s490 + $0x70] sm:$0xff]
        %507 = vrot.lane.b32.xlu0 %v491, 64
        %v508 = vpop.permute.xlu0 %507
        %509 = vrot.lane.b32.xlu0 %v492, 64
        %v510 = vpop.permute.xlu0 %509
        %511 = vrot.lane.b32.xlu0 %v493, 64
        %v512 = vpop.permute.xlu0 %511
        %513 = vrot.lane.b32.xlu0 %v494, 64
        %v514 = vpop.permute.xlu0 %513
        %515 = vrot.lane.b32.xlu0 %v495, 64
        %v516 = vpop.permute.xlu0 %515
        %517 = vrot.lane.b32.xlu0 %v496, 64
        %v518 = vpop.permute.xlu0 %517
        %519 = vrot.lane.b32.xlu0 %v497, 64
        %v520 = vpop.permute.xlu0 %519
        %521 = vrot.lane.b32.xlu0 %v498, 64
        %v522 = vpop.permute.xlu0 %521
        %531 = vst.msk [vmem:[#allocation2 + $0x8] sm:$0xff] %vm465, %v508
        %532 = vst.msk [vmem:[#allocation2 + $0x30] sm:$0xff] %vm465, %v510
        %533 = vst.msk [vmem:[#allocation2 + $0x58] sm:$0xff] %vm465, %v512
        %534 = vst.msk [vmem:[#allocation2 + $0x80] sm:$0xff] %vm465, %v514
        %535 = vst.msk [vmem:[#allocation2 + $0xa8] sm:$0xff] %vm465, %v516
        %536 = vst.msk [vmem:[#allocation2 + $0xd0] sm:$0xff] %vm465, %v518
        %537 = vst.msk [vmem:[#allocation2 + $0xf8] sm:$0xff] %vm465, %v520
        %538 = vst.msk [vmem:[#allocation2 + $0x120] sm:$0xff] %vm465, %v522
        %v539 = vld [vmem:[%s490 + $0x1] sm:$0xff]
        %v540 = vld [vmem:[%s490 + $0x11] sm:$0xff]
        %v541 = vld [vmem:[%s490 + $0x21] sm:$0xff]
        %v542 = vld [vmem:[%s490 + $0x31] sm:$0xff]
        %v543 = vld [vmem:[%s490 + $0x41] sm:$0xff]
        %v544 = vld [vmem:[%s490 + $0x51] sm:$0xff]
        %v545 = vld [vmem:[%s490 + $0x61] sm:$0xff]
        %v546 = vld [vmem:[%s490 + $0x71] sm:$0xff]
        %547 = vst.msk [vmem:[#allocation2 + $0x10] sm:$0xff] %vm416, %v539
        %548 = vst.msk [vmem:[#allocation2 + $0x38] sm:$0xff] %vm416, %v540
        %549 = vst.msk [vmem:[#allocation2 + $0x60] sm:$0xff] %vm416, %v541
        %550 = vst.msk [vmem:[#allocation2 + $0x88] sm:$0xff] %vm416, %v542
        %551 = vst.msk [vmem:[#allocation2 + $0xb0] sm:$0xff] %vm416, %v543
        %552 = vst.msk [vmem:[#allocation2 + $0xd8] sm:$0xff] %vm416, %v544
        %553 = vst.msk [vmem:[#allocation2 + $0x100] sm:$0xff] %vm416, %v545
        %554 = vst.msk [vmem:[#allocation2 + $0x128] sm:$0xff] %vm416, %v546
        %v555 = vld [vmem:[%s490 + $0x2] sm:$0xff]
        %v556 = vld [vmem:[%s490 + $0x12] sm:$0xff]
        %v557 = vld [vmem:[%s490 + $0x22] sm:$0xff]
        %v558 = vld [vmem:[%s490 + $0x32] sm:$0xff]
        %v559 = vld [vmem:[%s490 + $0x42] sm:$0xff]
        %v560 = vld [vmem:[%s490 + $0x52] sm:$0xff]
        %v561 = vld [vmem:[%s490 + $0x62] sm:$0xff]
        %v562 = vld [vmem:[%s490 + $0x72] sm:$0xff]
        %571 = vrot.lane.b32.xlu0 %v555, 64
        %v572 = vpop.permute.xlu0 %571
        %573 = vrot.lane.b32.xlu0 %v556, 64
        %v574 = vpop.permute.xlu0 %573
        %575 = vrot.lane.b32.xlu0 %v557, 64
        %v576 = vpop.permute.xlu0 %575
        %577 = vrot.lane.b32.xlu0 %v558, 64
        %v578 = vpop.permute.xlu0 %577
        %579 = vrot.lane.b32.xlu0 %v559, 64
        %v580 = vpop.permute.xlu0 %579
        %581 = vrot.lane.b32.xlu0 %v560, 64
        %v582 = vpop.permute.xlu0 %581
        %583 = vrot.lane.b32.xlu0 %v561, 64
        %v584 = vpop.permute.xlu0 %583
        %585 = vrot.lane.b32.xlu0 %v562, 64
        %v586 = vpop.permute.xlu0 %585
        %595 = vst.msk [vmem:[#allocation2 + $0x10] sm:$0xff] %vm465, %v572
        %596 = vst.msk [vmem:[#allocation2 + $0x38] sm:$0xff] %vm465, %v574
        %597 = vst.msk [vmem:[#allocation2 + $0x60] sm:$0xff] %vm465, %v576
        %598 = vst.msk [vmem:[#allocation2 + $0x88] sm:$0xff] %vm465, %v578
        %599 = vst.msk [vmem:[#allocation2 + $0xb0] sm:$0xff] %vm465, %v580
        %600 = vst.msk [vmem:[#allocation2 + $0xd8] sm:$0xff] %vm465, %v582
        %601 = vst.msk [vmem:[#allocation2 + $0x100] sm:$0xff] %vm465, %v584
        %602 = vst.msk [vmem:[#allocation2 + $0x128] sm:$0xff] %vm465, %v586
        %s603 = scalar_lea.vmem %s391, 32
        %v604 = vld [vmem:[%s603] sm:$0xff]
        %v605 = vld [vmem:[%s603 + $0x10] sm:$0xff]
        %v606 = vld [vmem:[%s603 + $0x20] sm:$0xff]
        %v607 = vld [vmem:[%s603 + $0x30] sm:$0xff]
        %v608 = vld [vmem:[%s603 + $0x40] sm:$0xff]
        %v609 = vld [vmem:[%s603 + $0x50] sm:$0xff]
        %v610 = vld [vmem:[%s603 + $0x60] sm:$0xff]
        %v611 = vld [vmem:[%s603 + $0x70] sm:$0xff]
        %612 = vst.msk [vmem:[#allocation2 + $0x18] sm:$0xff] %vm416, %v604
        %613 = vst.msk [vmem:[#allocation2 + $0x40] sm:$0xff] %vm416, %v605
        %614 = vst.msk [vmem:[#allocation2 + $0x68] sm:$0xff] %vm416, %v606
        %615 = vst.msk [vmem:[#allocation2 + $0x90] sm:$0xff] %vm416, %v607
        %616 = vst.msk [vmem:[#allocation2 + $0xb8] sm:$0xff] %vm416, %v608
        %617 = vst.msk [vmem:[#allocation2 + $0xe0] sm:$0xff] %vm416, %v609
        %618 = vst.msk [vmem:[#allocation2 + $0x108] sm:$0xff] %vm416, %v610
        %619 = vst.msk [vmem:[#allocation2 + $0x130] sm:$0xff] %vm416, %v611
        %v620 = vld [vmem:[%s603 + $0x1] sm:$0xff]
        %v621 = vld [vmem:[%s603 + $0x11] sm:$0xff]
        %v622 = vld [vmem:[%s603 + $0x21] sm:$0xff]
        %v623 = vld [vmem:[%s603 + $0x31] sm:$0xff]
        %v624 = vld [vmem:[%s603 + $0x41] sm:$0xff]
        %v625 = vld [vmem:[%s603 + $0x51] sm:$0xff]
        %v626 = vld [vmem:[%s603 + $0x61] sm:$0xff]
        %v627 = vld [vmem:[%s603 + $0x71] sm:$0xff]
        %636 = vrot.lane.b32.xlu0 %v620, 64
        %v637 = vpop.permute.xlu0 %636
        %638 = vrot.lane.b32.xlu0 %v621, 64
        %v639 = vpop.permute.xlu0 %638
        %640 = vrot.lane.b32.xlu0 %v622, 64
        %v641 = vpop.permute.xlu0 %640
        %642 = vrot.lane.b32.xlu0 %v623, 64
        %v643 = vpop.permute.xlu0 %642
        %644 = vrot.lane.b32.xlu0 %v624, 64
        %v645 = vpop.permute.xlu0 %644
        %646 = vrot.lane.b32.xlu0 %v625, 64
        %v647 = vpop.permute.xlu0 %646
        %648 = vrot.lane.b32.xlu0 %v626, 64
        %v649 = vpop.permute.xlu0 %648
        %650 = vrot.lane.b32.xlu0 %v627, 64
        %v651 = vpop.permute.xlu0 %650
        %660 = vst.msk [vmem:[#allocation2 + $0x18] sm:$0xff] %vm465, %v637
        %661 = vst.msk [vmem:[#allocation2 + $0x40] sm:$0xff] %vm465, %v639
        %662 = vst.msk [vmem:[#allocation2 + $0x68] sm:$0xff] %vm465, %v641
        %663 = vst.msk [vmem:[#allocation2 + $0x90] sm:$0xff] %vm465, %v643
        %664 = vst.msk [vmem:[#allocation2 + $0xb8] sm:$0xff] %vm465, %v645
        %665 = vst.msk [vmem:[#allocation2 + $0xe0] sm:$0xff] %vm465, %v647
        %666 = vst.msk [vmem:[#allocation2 + $0x108] sm:$0xff] %vm465, %v649
        %667 = vst.msk [vmem:[#allocation2 + $0x130] sm:$0xff] %vm465, %v651
        %v668 = vld [vmem:[%s603 + $0x2] sm:$0xff]
        %v669 = vld [vmem:[%s603 + $0x12] sm:$0xff]
        %v670 = vld [vmem:[%s603 + $0x22] sm:$0xff]
        %v671 = vld [vmem:[%s603 + $0x32] sm:$0xff]
        %v672 = vld [vmem:[%s603 + $0x42] sm:$0xff]
        %v673 = vld [vmem:[%s603 + $0x52] sm:$0xff]
        %v674 = vld [vmem:[%s603 + $0x62] sm:$0xff]
        %v675 = vld [vmem:[%s603 + $0x72] sm:$0xff]
        %676 = vst.msk [vmem:[#allocation2 + $0x20] sm:$0xff] %vm416, %v668
        %677 = vst.msk [vmem:[#allocation2 + $0x48] sm:$0xff] %vm416, %v669
        %678 = vst.msk [vmem:[#allocation2 + $0x70] sm:$0xff] %vm416, %v670
        %679 = vst.msk [vmem:[#allocation2 + $0x98] sm:$0xff] %vm416, %v671
        %680 = vst.msk [vmem:[#allocation2 + $0xc0] sm:$0xff] %vm416, %v672
        %681 = vst.msk [vmem:[#allocation2 + $0xe8] sm:$0xff] %vm416, %v673
        %682 = vst.msk [vmem:[#allocation2 + $0x110] sm:$0xff] %vm416, %v674
        %683 = vst.msk [vmem:[#allocation2 + $0x138] sm:$0xff] %vm416, %v675
        %v684 = vld [vmem:[#allocation2] sm:$0xff]
        %v685 = vld [vmem:[#allocation2 + $0x8] sm:$0xff]
        %v686 = vld [vmem:[#allocation2 + $0x10] sm:$0xff]
        %v687 = vld [vmem:[#allocation2 + $0x18] sm:$0xff]
        %v688 = vld [vmem:[#allocation2 + $0x20] sm:$0xff]
        %v689 = vld [vmem:[#allocation2 + $0x28] sm:$0xff]
        %v690 = vld [vmem:[#allocation2 + $0x30] sm:$0xff]
        %v691 = vld [vmem:[#allocation2 + $0x38] sm:$0xff]
        %v692 = vld [vmem:[#allocation2 + $0x40] sm:$0xff]
        %v693 = vld [vmem:[#allocation2 + $0x48] sm:$0xff]
        %v694 = vld [vmem:[#allocation2 + $0x50] sm:$0xff]
        %v695 = vld [vmem:[#allocation2 + $0x58] sm:$0xff]
        %v696 = vld [vmem:[#allocation2 + $0x60] sm:$0xff]
        %v697 = vld [vmem:[#allocation2 + $0x68] sm:$0xff]
        %v698 = vld [vmem:[#allocation2 + $0x70] sm:$0xff]
        %v699 = vld [vmem:[#allocation2 + $0x78] sm:$0xff]
        %v700 = vld [vmem:[#allocation2 + $0x80] sm:$0xff]
        %v701 = vld [vmem:[#allocation2 + $0x88] sm:$0xff]
        %v702 = vld [vmem:[#allocation2 + $0x90] sm:$0xff]
        %v703 = vld [vmem:[#allocation2 + $0x98] sm:$0xff]
        %v704 = vld [vmem:[#allocation2 + $0xa0] sm:$0xff]
        %v705 = vld [vmem:[#allocation2 + $0xa8] sm:$0xff]
        %v706 = vld [vmem:[#allocation2 + $0xb0] sm:$0xff]
        %v707 = vld [vmem:[#allocation2 + $0xb8] sm:$0xff]
        %v708 = vld [vmem:[#allocation2 + $0xc0] sm:$0xff]
        %v709 = vld [vmem:[#allocation2 + $0xc8] sm:$0xff]
        %v710 = vld [vmem:[#allocation2 + $0xd0] sm:$0xff]
        %v711 = vld [vmem:[#allocation2 + $0xd8] sm:$0xff]
        %v712 = vld [vmem:[#allocation2 + $0xe0] sm:$0xff]
        %v713 = vld [vmem:[#allocation2 + $0xe8] sm:$0xff]
        %v714 = vld [vmem:[#allocation2 + $0xf0] sm:$0xff]
        %v715 = vld [vmem:[#allocation2 + $0xf8] sm:$0xff]
        %v716 = vld [vmem:[#allocation2 + $0x100] sm:$0xff]
        %v717 = vld [vmem:[#allocation2 + $0x108] sm:$0xff]
        %v718 = vld [vmem:[#allocation2 + $0x110] sm:$0xff]
        %v719 = vld [vmem:[#allocation2 + $0x118] sm:$0xff]
        %v720 = vld [vmem:[#allocation2 + $0x120] sm:$0xff]
        %v721 = vld [vmem:[#allocation2 + $0x128] sm:$0xff]
        %v722 = vld [vmem:[#allocation2 + $0x130] sm:$0xff]
        %v723 = vld [vmem:[#allocation2 + $0x138] sm:$0xff]
        %v724 = vld [vmem:[#allocation5] sm:$0xff]
        %v725 = vld [vmem:[#allocation5 + $0x8] sm:$0xff]
        %v726 = vld [vmem:[#allocation5 + $0x10] sm:$0xff]
        %v727 = vld [vmem:[#allocation5 + $0x18] sm:$0xff]
        %v728 = vld [vmem:[#allocation5 + $0x20] sm:$0xff]
        %v729 = vld [vmem:[#allocation5 + $0x28] sm:$0xff]
        %v730 = vld [vmem:[#allocation5 + $0x30] sm:$0xff]
        %v731 = vld [vmem:[#allocation5 + $0x38] sm:$0xff]
        %v732 = vld [vmem:[#allocation5 + $0x40] sm:$0xff]
        %v733 = vld [vmem:[#allocation5 + $0x48] sm:$0xff]
        %v734 = vld [vmem:[#allocation5 + $0x50] sm:$0xff]
        %v735 = vld [vmem:[#allocation5 + $0x58] sm:$0xff]
        %v736 = vld [vmem:[#allocation5 + $0x60] sm:$0xff]
        %v737 = vld [vmem:[#allocation5 + $0x68] sm:$0xff]
        %v738 = vld [vmem:[#allocation5 + $0x70] sm:$0xff]
        %v739 = vld [vmem:[#allocation5 + $0x78] sm:$0xff]
        %v740 = vld [vmem:[#allocation5 + $0x80] sm:$0xff]
        %v741 = vld [vmem:[#allocation5 + $0x88] sm:$0xff]
        %v742 = vld [vmem:[#allocation5 + $0x90] sm:$0xff]
        %v743 = vld [vmem:[#allocation5 + $0x98] sm:$0xff]
        %v744 = vld [vmem:[#allocation5 + $0xa0] sm:$0xff]
        %v745 = vld [vmem:[#allocation5 + $0xa8] sm:$0xff]
        %v746 = vld [vmem:[#allocation5 + $0xb0] sm:$0xff]
        %v747 = vld [vmem:[#allocation5 + $0xb8] sm:$0xff]
        %v748 = vld [vmem:[#allocation5 + $0xc0] sm:$0xff]
        %v749 = vld [vmem:[#allocation5 + $0xc8] sm:$0xff]
        %v750 = vld [vmem:[#allocation5 + $0xd0] sm:$0xff]
        %v751 = vld [vmem:[#allocation5 + $0xd8] sm:$0xff]
        %v752 = vld [vmem:[#allocation5 + $0xe0] sm:$0xff]
        %v753 = vld [vmem:[#allocation5 + $0xe8] sm:$0xff]
        %v754 = vld [vmem:[#allocation5 + $0xf0] sm:$0xff]
        %v755 = vld [vmem:[#allocation5 + $0xf8] sm:$0xff]
        %v756 = vld [vmem:[#allocation5 + $0x100] sm:$0xff]
        %v757 = vld [vmem:[#allocation5 + $0x108] sm:$0xff]
        %v758 = vld [vmem:[#allocation5 + $0x110] sm:$0xff]
        %v759 = vld [vmem:[#allocation5 + $0x118] sm:$0xff]
        %v760 = vld [vmem:[#allocation5 + $0x120] sm:$0xff]
        %v761 = vld [vmem:[#allocation5 + $0x128] sm:$0xff]
        %v762 = vld [vmem:[#allocation5 + $0x130] sm:$0xff]
        %v763 = vld [vmem:[#allocation5 + $0x138] sm:$0xff]
        %v764 = vld [vmem:[#allocation5 + $0x140] sm:$0xff]
        %v765 = vld [vmem:[#allocation5 + $0x148] sm:$0xff]
        %v766 = vld [vmem:[#allocation5 + $0x150] sm:$0xff]
        %v767 = vld [vmem:[#allocation5 + $0x158] sm:$0xff]
        %v768 = vld [vmem:[#allocation5 + $0x160] sm:$0xff]
        %v769 = vld [vmem:[#allocation5 + $0x168] sm:$0xff]
        %v770 = vld [vmem:[#allocation5 + $0x170] sm:$0xff]
        %v771 = vld [vmem:[#allocation5 + $0x178] sm:$0xff]
        %v772 = vld [vmem:[#allocation5 + $0x180] sm:$0xff]
        %v773 = vld [vmem:[#allocation5 + $0x188] sm:$0xff]
        %v774 = vld [vmem:[#allocation5 + $0x190] sm:$0xff]
        %v775 = vld [vmem:[#allocation5 + $0x198] sm:$0xff]
        %v776 = vld [vmem:[#allocation5 + $0x1a0] sm:$0xff]
        %v777 = vld [vmem:[#allocation5 + $0x1a8] sm:$0xff]
        %v778 = vld [vmem:[#allocation5 + $0x1b0] sm:$0xff]
        %v779 = vld [vmem:[#allocation5 + $0x1b8] sm:$0xff]
        %v780 = vld [vmem:[#allocation5 + $0x1c0] sm:$0xff]
        %v781 = vld [vmem:[#allocation5 + $0x1c8] sm:$0xff]
        %v782 = vld [vmem:[#allocation5 + $0x1d0] sm:$0xff]
        %v783 = vld [vmem:[#allocation5 + $0x1d8] sm:$0xff]
        %v784 = vld [vmem:[#allocation5 + $0x1e0] sm:$0xff]
        %v785 = vld [vmem:[#allocation5 + $0x1e8] sm:$0xff]
        %v786 = vld [vmem:[#allocation5 + $0x1f0] sm:$0xff]
        %v787 = vld [vmem:[#allocation5 + $0x1f8] sm:$0xff]
        %v788 = vld [vmem:[#allocation5 + $0x200] sm:$0xff]
        %v789 = vld [vmem:[#allocation5 + $0x208] sm:$0xff]
        %v790 = vld [vmem:[#allocation5 + $0x210] sm:$0xff]
        %v791 = vld [vmem:[#allocation5 + $0x218] sm:$0xff]
        %v792 = vld [vmem:[#allocation5 + $0x220] sm:$0xff]
        %v793 = vld [vmem:[#allocation5 + $0x228] sm:$0xff]
        %v794 = vld [vmem:[#allocation5 + $0x230] sm:$0xff]
        %v795 = vld [vmem:[#allocation5 + $0x238] sm:$0xff]
        %v796 = vld [vmem:[%s2] sm:$0x1]
        %v798 = vperm.slane %v796, 0
        %v801 = vsel %vm416, %v688, 0
        %v804 = vsel %vm416, %v693, 0
        %v807 = vsel %vm416, %v698, 0
        %v810 = vsel %vm416, %v703, 0
        %v813 = vsel %vm416, %v708, 0
        %v816 = vsel %vm416, %v713, 0
        %v819 = vsel %vm416, %v718, 0
        %v822 = vsel %vm416, %v723, 0
        %824 = vmatpush.msra.mxu0 %v739
        %825 = vmatpush.msra.mxu0 %v738
        %826 = vmatpush.msra.mxu0 %v737
        %827 = vmatpush.msra.mxu0 %v736
        %828 = vmatpush.msra.mxu0 %v735
        %829 = vmatpush.msra.mxu0 %v734
        %830 = vmatpush.msra.mxu0 %v733
        %831 = vmatpush.msra.mxu0 %v732
        %832 = vmatpush.msra.mxu0 %v731
        %833 = vmatpush.msra.mxu0 %v730
        %834 = vmatpush.msra.mxu0 %v729
        %835 = vmatpush.msra.mxu0 %v728
        %836 = vmatpush.msra.mxu0 %v727
        %837 = vmatpush.msra.mxu0 %v726
        %838 = vmatpush.msra.mxu0 %v725
        %839 = vmatpush.msra.mxu0 %v724
        %840 = vmatmul.f32.gmra.mxu0 %v684
        %v841 = vpop.f32.mrf.mxu0
        %v842 = vadd.f32 %v798, %v841
        %843 = vmatmul.f32.gmra.mxu0 %v689
        %v844 = vpop.f32.mrf.mxu0
        %v845 = vadd.f32 %v798, %v844
        %846 = vmatmul.f32.gmra.mxu0 %v694
        %v847 = vpop.f32.mrf.mxu0
        %v848 = vadd.f32 %v798, %v847
        %849 = vmatmul.f32.gmra.mxu0 %v699
        %v850 = vpop.f32.mrf.mxu0
        %v851 = vadd.f32 %v798, %v850
        %852 = vmatmul.f32.gmra.mxu0 %v704
        %v853 = vpop.f32.mrf.mxu0
        %v854 = vadd.f32 %v798, %v853
        %855 = vmatmul.f32.gmra.mxu0 %v709
        %v856 = vpop.f32.mrf.mxu0
        %v857 = vadd.f32 %v798, %v856
        %858 = vmatmul.f32.gmra.mxu0 %v714
        %v859 = vpop.f32.mrf.mxu0
        %v860 = vadd.f32 %v798, %v859
        %861 = vmatmul.f32.gmra.mxu0 %v719
        %v862 = vpop.f32.mrf.mxu0
        %v863 = vadd.f32 %v798, %v862
        %864 = vdwg.mxu0
        %865 = vmatpush.msra.mxu0 %v755
        %866 = vmatpush.msra.mxu0 %v754
        %867 = vmatpush.msra.mxu0 %v753
        %868 = vmatpush.msra.mxu0 %v752
        %869 = vmatpush.msra.mxu0 %v751
        %870 = vmatpush.msra.mxu0 %v750
        %871 = vmatpush.msra.mxu0 %v749
        %872 = vmatpush.msra.mxu0 %v748
        %873 = vmatpush.msra.mxu0 %v747
        %874 = vmatpush.msra.mxu0 %v746
        %875 = vmatpush.msra.mxu0 %v745
        %876 = vmatpush.msra.mxu0 %v744
        %877 = vmatpush.msra.mxu0 %v743
        %878 = vmatpush.msra.mxu0 %v742
        %879 = vmatpush.msra.mxu0 %v741
        %880 = vmatpush.msra.mxu0 %v740
        %881 = vmatmul.f32.gmra.mxu0 %v685
        %v882 = vpop.f32.mrf.mxu0
        %v883 = vadd.f32 %v842, %v882
        %884 = vmatmul.f32.gmra.mxu0 %v690
        %v885 = vpop.f32.mrf.mxu0
        %v886 = vadd.f32 %v845, %v885
        %887 = vmatmul.f32.gmra.mxu0 %v695
        %v888 = vpop.f32.mrf.mxu0
        %v889 = vadd.f32 %v848, %v888
        %890 = vmatmul.f32.gmra.mxu0 %v700
        %v891 = vpop.f32.mrf.mxu0
        %v892 = vadd.f32 %v851, %v891
        %893 = vmatmul.f32.gmra.mxu0 %v705
        %v894 = vpop.f32.mrf.mxu0
        %v895 = vadd.f32 %v854, %v894
        %896 = vmatmul.f32.gmra.mxu0 %v710
        %v897 = vpop.f32.mrf.mxu0
        %v898 = vadd.f32 %v857, %v897
        %899 = vmatmul.f32.gmra.mxu0 %v715
        %v900 = vpop.f32.mrf.mxu0
        %v901 = vadd.f32 %v860, %v900
        %902 = vmatmul.f32.gmra.mxu0 %v720
        %v903 = vpop.f32.mrf.mxu0
        %v904 = vadd.f32 %v863, %v903
        %905 = vdwg.mxu0
        %906 = vmatpush.msra.mxu0 %v771
        %907 = vmatpush.msra.mxu0 %v770
        %908 = vmatpush.msra.mxu0 %v769
        %909 = vmatpush.msra.mxu0 %v768
        %910 = vmatpush.msra.mxu0 %v767
        %911 = vmatpush.msra.mxu0 %v766
        %912 = vmatpush.msra.mxu0 %v765
        %913 = vmatpush.msra.mxu0 %v764
        %914 = vmatpush.msra.mxu0 %v763
        %915 = vmatpush.msra.mxu0 %v762
        %916 = vmatpush.msra.mxu0 %v761
        %917 = vmatpush.msra.mxu0 %v760
        %918 = vmatpush.msra.mxu0 %v759
        %919 = vmatpush.msra.mxu0 %v758
        %920 = vmatpush.msra.mxu0 %v757
        %921 = vmatpush.msra.mxu0 %v756
        %922 = vmatmul.f32.gmra.mxu0 %v686
        %v923 = vpop.f32.mrf.mxu0
        %v924 = vadd.f32 %v883, %v923
        %925 = vmatmul.f32.gmra.mxu0 %v691
        %v926 = vpop.f32.mrf.mxu0
        %v927 = vadd.f32 %v886, %v926
        %928 = vmatmul.f32.gmra.mxu0 %v696
        %v929 = vpop.f32.mrf.mxu0
        %v930 = vadd.f32 %v889, %v929
        %931 = vmatmul.f32.gmra.mxu0 %v701
        %v932 = vpop.f32.mrf.mxu0
        %v933 = vadd.f32 %v892, %v932
        %934 = vmatmul.f32.gmra.mxu0 %v706
        %v935 = vpop.f32.mrf.mxu0
        %v936 = vadd.f32 %v895, %v935
        %937 = vmatmul.f32.gmra.mxu0 %v711
        %v938 = vpop.f32.mrf.mxu0
        %v939 = vadd.f32 %v898, %v938
        %940 = vmatmul.f32.gmra.mxu0 %v716
        %v941 = vpop.f32.mrf.mxu0
        %v942 = vadd.f32 %v901, %v941
        %943 = vmatmul.f32.gmra.mxu0 %v721
        %v944 = vpop.f32.mrf.mxu0
        %v945 = vadd.f32 %v904, %v944
        %946 = vdwg.mxu0
        %947 = vmatpush.msra.mxu0 %v787
        %948 = vmatpush.msra.mxu0 %v786
        %949 = vmatpush.msra.mxu0 %v785
        %950 = vmatpush.msra.mxu0 %v784
        %951 = vmatpush.msra.mxu0 %v783
        %952 = vmatpush.msra.mxu0 %v782
        %953 = vmatpush.msra.mxu0 %v781
        %954 = vmatpush.msra.mxu0 %v780
        %955 = vmatpush.msra.mxu0 %v779
        %956 = vmatpush.msra.mxu0 %v778
        %957 = vmatpush.msra.mxu0 %v777
        %958 = vmatpush.msra.mxu0 %v776
        %959 = vmatpush.msra.mxu0 %v775
        %960 = vmatpush.msra.mxu0 %v774
        %961 = vmatpush.msra.mxu0 %v773
        %962 = vmatpush.msra.mxu0 %v772
        %963 = vmatmul.f32.gmra.mxu0 %v687
        %v964 = vpop.f32.mrf.mxu0
        %v965 = vadd.f32 %v924, %v964
        %966 = vmatmul.f32.gmra.mxu0 %v692
        %v967 = vpop.f32.mrf.mxu0
        %v968 = vadd.f32 %v927, %v967
        %969 = vmatmul.f32.gmra.mxu0 %v697
        %v970 = vpop.f32.mrf.mxu0
        %v971 = vadd.f32 %v930, %v970
        %972 = vmatmul.f32.gmra.mxu0 %v702
        %v973 = vpop.f32.mrf.mxu0
        %v974 = vadd.f32 %v933, %v973
        %975 = vmatmul.f32.gmra.mxu0 %v707
        %v976 = vpop.f32.mrf.mxu0
        %v977 = vadd.f32 %v936, %v976
        %978 = vmatmul.f32.gmra.mxu0 %v712
        %v979 = vpop.f32.mrf.mxu0
        %v980 = vadd.f32 %v939, %v979
        %981 = vmatmul.f32.gmra.mxu0 %v717
        %v982 = vpop.f32.mrf.mxu0
        %v983 = vadd.f32 %v942, %v982
        %984 = vmatmul.f32.gmra.mxu0 %v722
        %v985 = vpop.f32.mrf.mxu0
        %v986 = vadd.f32 %v945, %v985
        %987 = vdwg.mxu0
        %988 = vmatpush.msra.mxu0 0.0
        %989 = vmatpush.msra.mxu0 0.0
        %990 = vmatpush.msra.mxu0 0.0
        %991 = vmatpush.msra.mxu0 0.0
        %992 = vmatpush.msra.mxu0 0.0
        %993 = vmatpush.msra.mxu0 0.0
        %994 = vmatpush.msra.mxu0 0.0
        %995 = vmatpush.msra.mxu0 0.0
        %996 = vmatpush.msra.mxu0 %v795
        %997 = vmatpush.msra.mxu0 %v794
        %998 = vmatpush.msra.mxu0 %v793
        %999 = vmatpush.msra.mxu0 %v792
        %1000 = vmatpush.msra.mxu0 %v791
        %1001 = vmatpush.msra.mxu0 %v790
        %1002 = vmatpush.msra.mxu0 %v789
        %1003 = vmatpush.msra.mxu0 %v788
        %1004 = vmatmul.f32.gmra.mxu0 %v801
        %v1005 = vpop.f32.mrf.mxu0
        %v1006 = vadd.f32 %v965, %v1005
        %1007 = vmatmul.f32.gmra.mxu0 %v804
        %v1008 = vpop.f32.mrf.mxu0
        %v1009 = vadd.f32 %v968, %v1008
        %1010 = vmatmul.f32.gmra.mxu0 %v807
        %v1011 = vpop.f32.mrf.mxu0
        %v1012 = vadd.f32 %v971, %v1011
        %1013 = vmatmul.f32.gmra.mxu0 %v810
        %v1014 = vpop.f32.mrf.mxu0
        %v1015 = vadd.f32 %v974, %v1014
        %1016 = vmatmul.f32.gmra.mxu0 %v813
        %v1017 = vpop.f32.mrf.mxu0
        %v1018 = vadd.f32 %v977, %v1017
        %1019 = vmatmul.f32.gmra.mxu0 %v816
        %v1020 = vpop.f32.mrf.mxu0
        %v1021 = vadd.f32 %v980, %v1020
        %1022 = vmatmul.f32.gmra.mxu0 %v819
        %v1023 = vpop.f32.mrf.mxu0
        %v1024 = vadd.f32 %v983, %v1023
        %1025 = vmatmul.f32.gmra.mxu0 %v822
        %v1026 = vpop.f32.mrf.mxu0
        %v1027 = vadd.f32 %v986, %v1026
        %1028 = vdwg.mxu0
        %v1029 = vld [vmem:[%s3] sm:$0x1]
        %v1030 = vld [vmem:[%s4] sm:$0x1]
        %v1031 = vadd.f32 %v1006, %v1009
        %v1032 = vadd.f32 %v1031, %v1012
        %v1033 = vadd.f32 %v1032, %v1015
        %v1034 = vadd.f32 %v1033, %v1018
        %v1035 = vadd.f32 %v1034, %v1021
        %v1036 = vadd.f32 %v1035, %v1024
        %v1037 = vadd.f32 %v1036, %v1027
        %v1038 = vrot.slane %v1037, 4
        %v1039 = vadd.f32 %v1037, %v1038
        %v1040 = vrot.slane %v1039, 2
        %v1041 = vadd.f32 %v1039, %v1040
        %v1042 = vrot.slane %v1041, 1
        %v1043 = vadd.f32 %v1041, %v1042
        %v1044 = vmul.f32 %v1006, %v1006
        %v1045 = vmul.f32 %v1009, %v1009
        %v1046 = vmul.f32 %v1012, %v1012
        %v1047 = vmul.f32 %v1015, %v1015
        %v1048 = vmul.f32 %v1018, %v1018
        %v1049 = vmul.f32 %v1021, %v1021
        %v1050 = vmul.f32 %v1024, %v1024
        %v1051 = vmul.f32 %v1027, %v1027
        %v1052 = vadd.f32 %v1044, %v1045
        %v1053 = vadd.f32 %v1052, %v1046
        %v1054 = vadd.f32 %v1053, %v1047
        %v1055 = vadd.f32 %v1054, %v1048
        %v1056 = vadd.f32 %v1055, %v1049
        %v1057 = vadd.f32 %v1056, %v1050
        %v1058 = vadd.f32 %v1057, %v1051
        %v1059 = vrot.slane %v1058, 4
        %v1060 = vadd.f32 %v1058, %v1059
        %v1061 = vrot.slane %v1060, 2
        %v1062 = vadd.f32 %v1060, %v1061
        %v1063 = vrot.slane %v1062, 1
        %v1064 = vadd.f32 %v1062, %v1063
        %1065 = vmatpush.msra.mxu0 %v407
        %1066 = vmatpush.msra.mxu0 %v406
        %1067 = vmatpush.msra.mxu0 %v405
        %1068 = vmatpush.msra.mxu0 %v404
        %1069 = vmatpush.msra.mxu0 %v403
        %1070 = vmatpush.msra.mxu0 %v402
        %1071 = vmatpush.msra.mxu0 %v401
        %1072 = vmatpush.msra.mxu0 %v400
        %1073 = vmatpush.msra.mxu0 %v399
        %1074 = vmatpush.msra.mxu0 %v398
        %1075 = vmatpush.msra.mxu0 %v397
        %1076 = vmatpush.msra.mxu0 %v396
        %1077 = vmatpush.msra.mxu0 %v395
        %1078 = vmatpush.msra.mxu0 %v394
        %1079 = vmatpush.msra.mxu0 %v393
        %1080 = vmatpush.msra.mxu0 %v392
        %1081 = vmatmul.f32.gmra.mxu0 %v1043
        %v1082 = vpop.f32.mrf.mxu0
        %v1083 = vadd.f32 0.0, %v1082
        %1084 = vdwg.mxu0
        %1085 = vmatpush.msra.mxu0 %v407
        %1086 = vmatpush.msra.mxu0 %v406
        %1087 = vmatpush.msra.mxu0 %v405
        %1088 = vmatpush.msra.mxu0 %v404
        %1089 = vmatpush.msra.mxu0 %v403
        %1090 = vmatpush.msra.mxu0 %v402
        %1091 = vmatpush.msra.mxu0 %v401
        %1092 = vmatpush.msra.mxu0 %v400
        %1093 = vmatpush.msra.mxu0 %v399
        %1094 = vmatpush.msra.mxu0 %v398
        %1095 = vmatpush.msra.mxu0 %v397
        %1096 = vmatpush.msra.mxu0 %v396
        %1097 = vmatpush.msra.mxu0 %v395
        %1098 = vmatpush.msra.mxu0 %v394
        %1099 = vmatpush.msra.mxu0 %v393
        %1100 = vmatpush.msra.mxu0 %v392
        %1101 = vmatmul.f32.gmra.mxu0 %v1064
        %v1102 = vpop.f32.mrf.mxu0
        %v1103 = vadd.f32 0.0, %v1102
        %1104 = vdwg.mxu0
        %v1105 = vmul.f32 %v1083, %v1083
        %v1106 = vsub.f32 %v1103, %v1105
        %v1107 = vadd.f32 %v1106, 1e-05
        %v1108 = vrsqrt.pop %v1107
        %v1109 = vmul.f32 %v1108, %v1107
        %v1110 = vmul.f32 %v1109, %v1108
        %v1111 = vmul.f32 0.5, %v1110
        %v1112 = vsub.f32 1.5, %v1111
        %v1113 = vmul.f32 %v1108, %v1112
        %vm1114 = vweird.f32 %v1107
        %vm1115 = vweird.f32 %v1108
        %vm1116 = vmor %vm1114, %vm1115
        %v1117 = vsel %vm1116, %v1108, %v1113
        %v1118 = vmul.f32 %v1117, %v1029
        %v1119 = vmul.f32 %v1083, %v1118
        %v1120 = vsub.f32 %v1030, %v1119
        %v1121 = vperm.slane %v1118, 0
        %v1122 = vmul.f32 %v1006, %v1121
        %v1123 = vmul.f32 %v1009, %v1121
        %v1124 = vmul.f32 %v1012, %v1121
        %v1125 = vmul.f32 %v1015, %v1121
        %v1126 = vmul.f32 %v1018, %v1121
        %v1127 = vmul.f32 %v1021, %v1121
        %v1128 = vmul.f32 %v1024, %v1121
        %v1129 = vmul.f32 %v1027, %v1121
        %v1131 = vperm.slane %v1120, 0
        %v1133 = vadd.f32 %v1122, %v1131
        %v1134 = vadd.f32 %v1123, %v1131
        %v1135 = vadd.f32 %v1124, %v1131
        %v1136 = vadd.f32 %v1125, %v1131
        %v1137 = vadd.f32 %v1126, %v1131
        %v1138 = vadd.f32 %v1127, %v1131
        %v1139 = vadd.f32 %v1128, %v1131
        %v1140 = vadd.f32 %v1129, %v1131
        %v1141 = vmax.f32 %v1133, 0.0
        %v1142 = vmax.f32 %v1134, 0.0
        %v1143 = vmax.f32 %v1135, 0.0
        %v1144 = vmax.f32 %v1136, 0.0
        %v1145 = vmax.f32 %v1137, 0.0
        %v1146 = vmax.f32 %v1138, 0.0
        %v1147 = vmax.f32 %v1139, 0.0
        %v1148 = vmax.f32 %v1140, 0.0
        %1149 = vst [vmem:[#allocation4] sm:$0xff] 0.0
        %1150 = vst [vmem:[#allocation4 + $0x8] sm:$0x3] 0.0
        %s1151 = scalar_lea.vmem [#allocation4], 144
        %1152 = vst [vmem:[%s1151] sm:$0xff] 0.0
        %1153 = vst [vmem:[%s1151 + $0x8] sm:$0x3] 0.0
        %s1154 = scalar_lea.vmem [#allocation4], 16
        %1155 = vst [vmem:[%s1154] sm:$0x1] 0.0
        %1156 = vst [vmem:[%s1154 + $0x10] sm:$0x1] 0.0
        %1157 = vst [vmem:[%s1154 + $0x20] sm:$0x1] 0.0
        %1158 = vst [vmem:[%s1154 + $0x30] sm:$0x1] 0.0
        %1159 = vst [vmem:[%s1154 + $0x40] sm:$0x1] 0.0
        %1160 = vst [vmem:[%s1154 + $0x50] sm:$0x1] 0.0
        %1161 = vst [vmem:[%s1154 + $0x60] sm:$0x1] 0.0
        %1162 = vst [vmem:[%s1154 + $0x70] sm:$0x1] 0.0
        %1163 = vst [vmem:[%s1154 + $0x9] sm:$0x1] 0.0
        %1164 = vst [vmem:[%s1154 + $0x19] sm:$0x1] 0.0
        %1165 = vst [vmem:[%s1154 + $0x29] sm:$0x1] 0.0
        %1166 = vst [vmem:[%s1154 + $0x39] sm:$0x1] 0.0
        %1167 = vst [vmem:[%s1154 + $0x49] sm:$0x1] 0.0
        %1168 = vst [vmem:[%s1154 + $0x59] sm:$0x1] 0.0
        %1169 = vst [vmem:[%s1154 + $0x69] sm:$0x1] 0.0
        %1170 = vst [vmem:[%s1154 + $0x79] sm:$0x1] 0.0
        %1171 = vst [vmem:[%s1154 + $0x1] sm:$0xff] %v1141
        %1172 = vst [vmem:[%s1154 + $0x11] sm:$0xff] %v1142
        %1173 = vst [vmem:[%s1154 + $0x21] sm:$0xff] %v1143
        %1174 = vst [vmem:[%s1154 + $0x31] sm:$0xff] %v1144
        %1175 = vst [vmem:[%s1154 + $0x41] sm:$0xff] %v1145
        %1176 = vst [vmem:[%s1154 + $0x51] sm:$0xff] %v1146
        %1177 = vst [vmem:[%s1154 + $0x61] sm:$0xff] %v1147
        %1178 = vst [vmem:[%s1154 + $0x71] sm:$0xff] %v1148
        %v1179 = vld [vmem:[#allocation4] sm:$0xff]
        %v1180 = vld [vmem:[#allocation4 + $0x10] sm:$0xff]
        %v1181 = vld [vmem:[#allocation4 + $0x20] sm:$0xff]
        %v1182 = vld [vmem:[#allocation4 + $0x30] sm:$0xff]
        %v1183 = vld [vmem:[#allocation4 + $0x40] sm:$0xff]
        %v1184 = vld [vmem:[#allocation4 + $0x50] sm:$0xff]
        %v1185 = vld [vmem:[#allocation4 + $0x60] sm:$0xff]
        %v1186 = vld [vmem:[#allocation4 + $0x70] sm:$0xff]
        %1187 = vst [vmem:[#allocation3] sm:$0xff] %v1179
        %1188 = vst [vmem:[#allocation3 + $0x48] sm:$0xff] %v1180
        %1189 = vst [vmem:[#allocation3 + $0x90] sm:$0xff] %v1181
        %1190 = vst [vmem:[#allocation3 + $0xd8] sm:$0xff] %v1182
        %1191 = vst [vmem:[#allocation3 + $0x120] sm:$0xff] %v1183
        %1192 = vst [vmem:[#allocation3 + $0x168] sm:$0xff] %v1184
        %1193 = vst [vmem:[#allocation3 + $0x1b0] sm:$0xff] %v1185
        %1194 = vst [vmem:[#allocation3 + $0x1f8] sm:$0xff] %v1186
        %v1195 = vld [vmem:[#allocation4 + $0x1] sm:$0xff]
        %v1196 = vld [vmem:[#allocation4 + $0x11] sm:$0xff]
        %v1197 = vld [vmem:[#allocation4 + $0x21] sm:$0xff]
        %v1198 = vld [vmem:[#allocation4 + $0x31] sm:$0xff]
        %v1199 = vld [vmem:[#allocation4 + $0x41] sm:$0xff]
        %v1200 = vld [vmem:[#allocation4 + $0x51] sm:$0xff]
        %v1201 = vld [vmem:[#allocation4 + $0x61] sm:$0xff]
        %v1202 = vld [vmem:[#allocation4 + $0x71] sm:$0xff]
        %1203 = vst [vmem:[#allocation3 + $0x8] sm:$0xff] %v1195
        %1204 = vst [vmem:[#allocation3 + $0x50] sm:$0xff] %v1196
        %1205 = vst [vmem:[#allocation3 + $0x98] sm:$0xff] %v1197
        %1206 = vst [vmem:[#allocation3 + $0xe0] sm:$0xff] %v1198
        %1207 = vst [vmem:[#allocation3 + $0x128] sm:$0xff] %v1199
        %1208 = vst [vmem:[#allocation3 + $0x170] sm:$0xff] %v1200
        %1209 = vst [vmem:[#allocation3 + $0x1b8] sm:$0xff] %v1201
        %1210 = vst [vmem:[#allocation3 + $0x200] sm:$0xff] %v1202
        %v1211 = vld [vmem:[#allocation4 + $0x2] sm:$0xff]
        %v1212 = vld [vmem:[#allocation4 + $0x12] sm:$0xff]
        %v1213 = vld [vmem:[#allocation4 + $0x22] sm:$0xff]
        %v1214 = vld [vmem:[#allocation4 + $0x32] sm:$0xff]
        %v1215 = vld [vmem:[#allocation4 + $0x42] sm:$0xff]
        %v1216 = vld [vmem:[#allocation4 + $0x52] sm:$0xff]
        %v1217 = vld [vmem:[#allocation4 + $0x62] sm:$0xff]
        %v1218 = vld [vmem:[#allocation4 + $0x72] sm:$0xff]
        %1219 = vst [vmem:[#allocation3 + $0x10] sm:$0xff] %v1211
        %1220 = vst [vmem:[#allocation3 + $0x58] sm:$0xff] %v1212
        %1221 = vst [vmem:[#allocation3 + $0xa0] sm:$0xff] %v1213
        %1222 = vst [vmem:[#allocation3 + $0xe8] sm:$0xff] %v1214
        %1223 = vst [vmem:[#allocation3 + $0x130] sm:$0xff] %v1215
        %1224 = vst [vmem:[#allocation3 + $0x178] sm:$0xff] %v1216
        %1225 = vst [vmem:[#allocation3 + $0x1c0] sm:$0xff] %v1217
        %1226 = vst [vmem:[#allocation3 + $0x208] sm:$0xff] %v1218
        %v1227 = vld [vmem:[%s1154] sm:$0xff]
        %v1228 = vld [vmem:[%s1154 + $0x10] sm:$0xff]
        %v1229 = vld [vmem:[%s1154 + $0x20] sm:$0xff]
        %v1230 = vld [vmem:[%s1154 + $0x30] sm:$0xff]
        %v1231 = vld [vmem:[%s1154 + $0x40] sm:$0xff]
        %v1232 = vld [vmem:[%s1154 + $0x50] sm:$0xff]
        %v1233 = vld [vmem:[%s1154 + $0x60] sm:$0xff]
        %v1234 = vld [vmem:[%s1154 + $0x70] sm:$0xff]
        %1235 = vst [vmem:[#allocation3 + $0x18] sm:$0xff] %v1227
        %1236 = vst [vmem:[#allocation3 + $0x60] sm:$0xff] %v1228
        %1237 = vst [vmem:[#allocation3 + $0xa8] sm:$0xff] %v1229
        %1238 = vst [vmem:[#allocation3 + $0xf0] sm:$0xff] %v1230
        %1239 = vst [vmem:[#allocation3 + $0x138] sm:$0xff] %v1231
        %1240 = vst [vmem:[#allocation3 + $0x180] sm:$0xff] %v1232
        %1241 = vst [vmem:[#allocation3 + $0x1c8] sm:$0xff] %v1233
        %1242 = vst [vmem:[#allocation3 + $0x210] sm:$0xff] %v1234
        %v1243 = vld [vmem:[%s1154 + $0x1] sm:$0xff]
        %v1244 = vld [vmem:[%s1154 + $0x11] sm:$0xff]
        %v1245 = vld [vmem:[%s1154 + $0x21] sm:$0xff]
        %v1246 = vld [vmem:[%s1154 + $0x31] sm:$0xff]
        %v1247 = vld [vmem:[%s1154 + $0x41] sm:$0xff]
        %v1248 = vld [vmem:[%s1154 + $0x51] sm:$0xff]
        %v1249 = vld [vmem:[%s1154 + $0x61] sm:$0xff]
        %v1250 = vld [vmem:[%s1154 + $0x71] sm:$0xff]
        %1251 = vst [vmem:[#allocation3 + $0x20] sm:$0xff] %v1243
        %1252 = vst [vmem:[#allocation3 + $0x68] sm:$0xff] %v1244
        %1253 = vst [vmem:[#allocation3 + $0xb0] sm:$0xff] %v1245
        %1254 = vst [vmem:[#allocation3 + $0xf8] sm:$0xff] %v1246
        %1255 = vst [vmem:[#allocation3 + $0x140] sm:$0xff] %v1247
        %1256 = vst [vmem:[#allocation3 + $0x188] sm:$0xff] %v1248
        %1257 = vst [vmem:[#allocation3 + $0x1d0] sm:$0xff] %v1249
        %1258 = vst [vmem:[#allocation3 + $0x218] sm:$0xff] %v1250
        %v1259 = vld [vmem:[%s1154 + $0x2] sm:$0xff]
        %v1260 = vld [vmem:[%s1154 + $0x12] sm:$0xff]
        %v1261 = vld [vmem:[%s1154 + $0x22] sm:$0xff]
        %v1262 = vld [vmem:[%s1154 + $0x32] sm:$0xff]
        %v1263 = vld [vmem:[%s1154 + $0x42] sm:$0xff]
        %v1264 = vld [vmem:[%s1154 + $0x52] sm:$0xff]
        %v1265 = vld [vmem:[%s1154 + $0x62] sm:$0xff]
        %v1266 = vld [vmem:[%s1154 + $0x72] sm:$0xff]
        %1267 = vst [vmem:[#allocation3 + $0x28] sm:$0xff] %v1259
        %1268 = vst [vmem:[#allocation3 + $0x70] sm:$0xff] %v1260
        %1269 = vst [vmem:[#allocation3 + $0xb8] sm:$0xff] %v1261
        %1270 = vst [vmem:[#allocation3 + $0x100] sm:$0xff] %v1262
        %1271 = vst [vmem:[#allocation3 + $0x148] sm:$0xff] %v1263
        %1272 = vst [vmem:[#allocation3 + $0x190] sm:$0xff] %v1264
        %1273 = vst [vmem:[#allocation3 + $0x1d8] sm:$0xff] %v1265
        %1274 = vst [vmem:[#allocation3 + $0x220] sm:$0xff] %v1266
        %s1275 = scalar_lea.vmem [#allocation4], 32
        %v1276 = vld [vmem:[%s1275] sm:$0xff]
        %v1277 = vld [vmem:[%s1275 + $0x10] sm:$0xff]
        %v1278 = vld [vmem:[%s1275 + $0x20] sm:$0xff]
        %v1279 = vld [vmem:[%s1275 + $0x30] sm:$0xff]
        %v1280 = vld [vmem:[%s1275 + $0x40] sm:$0xff]
        %v1281 = vld [vmem:[%s1275 + $0x50] sm:$0xff]
        %v1282 = vld [vmem:[%s1275 + $0x60] sm:$0xff]
        %v1283 = vld [vmem:[%s1275 + $0x70] sm:$0xff]
        %1284 = vst [vmem:[#allocation3 + $0x30] sm:$0xff] %v1276
        %1285 = vst [vmem:[#allocation3 + $0x78] sm:$0xff] %v1277
        %1286 = vst [vmem:[#allocation3 + $0xc0] sm:$0xff] %v1278
        %1287 = vst [vmem:[#allocation3 + $0x108] sm:$0xff] %v1279
        %1288 = vst [vmem:[#allocation3 + $0x150] sm:$0xff] %v1280
        %1289 = vst [vmem:[#allocation3 + $0x198] sm:$0xff] %v1281
        %1290 = vst [vmem:[#allocation3 + $0x1e0] sm:$0xff] %v1282
        %1291 = vst [vmem:[#allocation3 + $0x228] sm:$0xff] %v1283
        %v1292 = vld [vmem:[%s1275 + $0x1] sm:$0xff]
        %v1293 = vld [vmem:[%s1275 + $0x11] sm:$0xff]
        %v1294 = vld [vmem:[%s1275 + $0x21] sm:$0xff]
        %v1295 = vld [vmem:[%s1275 + $0x31] sm:$0xff]
        %v1296 = vld [vmem:[%s1275 + $0x41] sm:$0xff]
        %v1297 = vld [vmem:[%s1275 + $0x51] sm:$0xff]
        %v1298 = vld [vmem:[%s1275 + $0x61] sm:$0xff]
        %v1299 = vld [vmem:[%s1275 + $0x71] sm:$0xff]
        %1300 = vst [vmem:[#allocation3 + $0x38] sm:$0xff] %v1292
        %1301 = vst [vmem:[#allocation3 + $0x80] sm:$0xff] %v1293
        %1302 = vst [vmem:[#allocation3 + $0xc8] sm:$0xff] %v1294
        %1303 = vst [vmem:[#allocation3 + $0x110] sm:$0xff] %v1295
        %1304 = vst [vmem:[#allocation3 + $0x158] sm:$0xff] %v1296
        %1305 = vst [vmem:[#allocation3 + $0x1a0] sm:$0xff] %v1297
        %1306 = vst [vmem:[#allocation3 + $0x1e8] sm:$0xff] %v1298
        %1307 = vst [vmem:[#allocation3 + $0x230] sm:$0xff] %v1299
        %v1308 = vld [vmem:[%s1275 + $0x2] sm:$0xff]
        %v1309 = vld [vmem:[%s1275 + $0x12] sm:$0xff]
        %v1310 = vld [vmem:[%s1275 + $0x22] sm:$0xff]
        %v1311 = vld [vmem:[%s1275 + $0x32] sm:$0xff]
        %v1312 = vld [vmem:[%s1275 + $0x42] sm:$0xff]
        %v1313 = vld [vmem:[%s1275 + $0x52] sm:$0xff]
        %v1314 = vld [vmem:[%s1275 + $0x62] sm:$0xff]
        %v1315 = vld [vmem:[%s1275 + $0x72] sm:$0xff]
        %1316 = vst [vmem:[#allocation3 + $0x40] sm:$0xff] %v1308
        %1317 = vst [vmem:[#allocation3 + $0x88] sm:$0xff] %v1309
        %1318 = vst [vmem:[#allocation3 + $0xd0] sm:$0xff] %v1310
        %1319 = vst [vmem:[#allocation3 + $0x118] sm:$0xff] %v1311
        %1320 = vst [vmem:[#allocation3 + $0x160] sm:$0xff] %v1312
        %1321 = vst [vmem:[#allocation3 + $0x1a8] sm:$0xff] %v1313
        %1322 = vst [vmem:[#allocation3 + $0x1f0] sm:$0xff] %v1314
        %1323 = vst [vmem:[#allocation3 + $0x238] sm:$0xff] %v1315
        %v1324 = vld [vmem:[#allocation3] sm:$0xff]
        %v1325 = vld [vmem:[#allocation3 + $0x8] sm:$0xff]
        %v1326 = vld [vmem:[#allocation3 + $0x10] sm:$0xff]
        %v1327 = vld [vmem:[#allocation3 + $0x18] sm:$0xff]
        %v1328 = vld [vmem:[#allocation3 + $0x20] sm:$0xff]
        %v1329 = vld [vmem:[#allocation3 + $0x28] sm:$0xff]
        %v1330 = vld [vmem:[#allocation3 + $0x30] sm:$0xff]
        %v1331 = vld [vmem:[#allocation3 + $0x38] sm:$0xff]
        %v1332 = vld [vmem:[#allocation3 + $0x40] sm:$0xff]
        %v1333 = vld [vmem:[#allocation3 + $0x48] sm:$0xff]
        %v1334 = vld [vmem:[#allocation3 + $0x50] sm:$0xff]
        %v1335 = vld [vmem:[#allocation3 + $0x58] sm:$0xff]
        %v1336 = vld [vmem:[#allocation3 + $0x60] sm:$0xff]
        %v1337 = vld [vmem:[#allocation3 + $0x68] sm:$0xff]
        %v1338 = vld [vmem:[#allocation3 + $0x70] sm:$0xff]
        %v1339 = vld [vmem:[#allocation3 + $0x78] sm:$0xff]
        %v1340 = vld [vmem:[#allocation3 + $0x80] sm:$0xff]
        %v1341 = vld [vmem:[#allocation3 + $0x88] sm:$0xff]
        %v1342 = vld [vmem:[#allocation3 + $0x90] sm:$0xff]
        %v1343 = vld [vmem:[#allocation3 + $0x98] sm:$0xff]
        %v1344 = vld [vmem:[#allocation3 + $0xa0] sm:$0xff]
        %v1345 = vld [vmem:[#allocation3 + $0xa8] sm:$0xff]
        %v1346 = vld [vmem:[#allocation3 + $0xb0] sm:$0xff]
        %v1347 = vld [vmem:[#allocation3 + $0xb8] sm:$0xff]
        %v1348 = vld [vmem:[#allocation3 + $0xc0] sm:$0xff]
        %v1349 = vld [vmem:[#allocation3 + $0xc8] sm:$0xff]
        %v1350 = vld [vmem:[#allocation3 + $0xd0] sm:$0xff]
        %v1351 = vld [vmem:[#allocation3 + $0xd8] sm:$0xff]
        %v1352 = vld [vmem:[#allocation3 + $0xe0] sm:$0xff]
        %v1353 = vld [vmem:[#allocation3 + $0xe8] sm:$0xff]
        %v1354 = vld [vmem:[#allocation3 + $0xf0] sm:$0xff]
        %v1355 = vld [vmem:[#allocation3 + $0xf8] sm:$0xff]
        %v1356 = vld [vmem:[#allocation3 + $0x100] sm:$0xff]
        %v1357 = vld [vmem:[#allocation3 + $0x108] sm:$0xff]
        %v1358 = vld [vmem:[#allocation3 + $0x110] sm:$0xff]
        %v1359 = vld [vmem:[#allocation3 + $0x118] sm:$0xff]
        %v1360 = vld [vmem:[#allocation3 + $0x120] sm:$0xff]
        %v1361 = vld [vmem:[#allocation3 + $0x128] sm:$0xff]
        %v1362 = vld [vmem:[#allocation3 + $0x130] sm:$0xff]
        %v1363 = vld [vmem:[#allocation3 + $0x138] sm:$0xff]
        %v1364 = vld [vmem:[#allocation3 + $0x140] sm:$0xff]
        %v1365 = vld [vmem:[#allocation3 + $0x148] sm:$0xff]
        %v1366 = vld [vmem:[#allocation3 + $0x150] sm:$0xff]
        %v1367 = vld [vmem:[#allocation3 + $0x158] sm:$0xff]
        %v1368 = vld [vmem:[#allocation3 + $0x160] sm:$0xff]
        %v1369 = vld [vmem:[#allocation3 + $0x168] sm:$0xff]
        %v1370 = vld [vmem:[#allocation3 + $0x170] sm:$0xff]
        %v1371 = vld [vmem:[#allocation3 + $0x178] sm:$0xff]
        %v1372 = vld [vmem:[#allocation3 + $0x180] sm:$0xff]
        %v1373 = vld [vmem:[#allocation3 + $0x188] sm:$0xff]
        %v1374 = vld [vmem:[#allocation3 + $0x190] sm:$0xff]
        %v1375 = vld [vmem:[#allocation3 + $0x198] sm:$0xff]
        %v1376 = vld [vmem:[#allocation3 + $0x1a0] sm:$0xff]
        %v1377 = vld [vmem:[#allocation3 + $0x1a8] sm:$0xff]
        %v1378 = vld [vmem:[#allocation3 + $0x1b0] sm:$0xff]
        %v1379 = vld [vmem:[#allocation3 + $0x1b8] sm:$0xff]
        %v1380 = vld [vmem:[#allocation3 + $0x1c0] sm:$0xff]
        %v1381 = vld [vmem:[#allocation3 + $0x1c8] sm:$0xff]
        %v1382 = vld [vmem:[#allocation3 + $0x1d0] sm:$0xff]
        %v1383 = vld [vmem:[#allocation3 + $0x1d8] sm:$0xff]
        %v1384 = vld [vmem:[#allocation3 + $0x1e0] sm:$0xff]
        %v1385 = vld [vmem:[#allocation3 + $0x1e8] sm:$0xff]
        %v1386 = vld [vmem:[#allocation3 + $0x1f0] sm:$0xff]
        %v1387 = vld [vmem:[#allocation3 + $0x1f8] sm:$0xff]
        %v1388 = vld [vmem:[#allocation3 + $0x200] sm:$0xff]
        %v1389 = vld [vmem:[#allocation3 + $0x208] sm:$0xff]
        %v1390 = vld [vmem:[#allocation3 + $0x210] sm:$0xff]
        %v1391 = vld [vmem:[#allocation3 + $0x218] sm:$0xff]
        %v1392 = vld [vmem:[#allocation3 + $0x220] sm:$0xff]
        %v1393 = vld [vmem:[#allocation3 + $0x228] sm:$0xff]
        %v1394 = vld [vmem:[#allocation3 + $0x230] sm:$0xff]
        %v1395 = vld [vmem:[#allocation3 + $0x238] sm:$0xff]
        %v1396 = vld [vmem:[#allocation8] sm:$0xff]
        %v1397 = vld [vmem:[#allocation8 + $0x8] sm:$0xff]
        %v1398 = vld [vmem:[#allocation8 + $0x10] sm:$0xff]
        %v1399 = vld [vmem:[#allocation8 + $0x18] sm:$0xff]
        %v1400 = vld [vmem:[#allocation8 + $0x20] sm:$0xff]
        %v1401 = vld [vmem:[#allocation8 + $0x28] sm:$0xff]
        %v1402 = vld [vmem:[#allocation8 + $0x30] sm:$0xff]
        %v1403 = vld [vmem:[#allocation8 + $0x38] sm:$0xff]
        %v1404 = vld [vmem:[#allocation8 + $0x40] sm:$0xff]
        %v1405 = vld [vmem:[#allocation8 + $0x48] sm:$0xff]
        %v1406 = vld [vmem:[#allocation8 + $0x50] sm:$0xff]
        %v1407 = vld [vmem:[#allocation8 + $0x58] sm:$0xff]
        %v1408 = vld [vmem:[#allocation8 + $0x60] sm:$0xff]
        %v1409 = vld [vmem:[#allocation8 + $0x68] sm:$0xff]
        %v1410 = vld [vmem:[#allocation8 + $0x70] sm:$0xff]
        %v1411 = vld [vmem:[#allocation8 + $0x78] sm:$0xff]
        %v1412 = vld [vmem:[#allocation8 + $0x80] sm:$0xff]
        %v1413 = vld [vmem:[#allocation8 + $0x88] sm:$0xff]
        %v1414 = vld [vmem:[#allocation8 + $0x90] sm:$0xff]
        %v1415 = vld [vmem:[#allocation8 + $0x98] sm:$0xff]
        %v1416 = vld [vmem:[#allocation8 + $0xa0] sm:$0xff]
        %v1417 = vld [vmem:[#allocation8 + $0xa8] sm:$0xff]
        %v1418 = vld [vmem:[#allocation8 + $0xb0] sm:$0xff]
        %v1419 = vld [vmem:[#allocation8 + $0xb8] sm:$0xff]
        %v1420 = vld [vmem:[#allocation8 + $0xc0] sm:$0xff]
        %v1421 = vld [vmem:[#allocation8 + $0xc8] sm:$0xff]
        %v1422 = vld [vmem:[#allocation8 + $0xd0] sm:$0xff]
        %v1423 = vld [vmem:[#allocation8 + $0xd8] sm:$0xff]
        %v1424 = vld [vmem:[#allocation8 + $0xe0] sm:$0xff]
        %v1425 = vld [vmem:[#allocation8 + $0xe8] sm:$0xff]
        %v1426 = vld [vmem:[#allocation8 + $0xf0] sm:$0xff]
        %v1427 = vld [vmem:[#allocation8 + $0xf8] sm:$0xff]
        %v1428 = vld [vmem:[#allocation8 + $0x100] sm:$0xff]
        %v1429 = vld [vmem:[#allocation8 + $0x108] sm:$0xff]
        %v1430 = vld [vmem:[#allocation8 + $0x110] sm:$0xff]
        %v1431 = vld [vmem:[#allocation8 + $0x118] sm:$0xff]
        %v1432 = vld [vmem:[#allocation8 + $0x120] sm:$0xff]
        %v1433 = vld [vmem:[#allocation8 + $0x128] sm:$0xff]
        %v1434 = vld [vmem:[#allocation8 + $0x130] sm:$0xff]
        %v1435 = vld [vmem:[#allocation8 + $0x138] sm:$0xff]
        %v1436 = vld [vmem:[#allocation8 + $0x140] sm:$0xff]
        %v1437 = vld [vmem:[#allocation8 + $0x148] sm:$0xff]
        %v1438 = vld [vmem:[#allocation8 + $0x150] sm:$0xff]
        %v1439 = vld [vmem:[#allocation8 + $0x158] sm:$0xff]
        %v1440 = vld [vmem:[#allocation8 + $0x160] sm:$0xff]
        %v1441 = vld [vmem:[#allocation8 + $0x168] sm:$0xff]
        %v1442 = vld [vmem:[#allocation8 + $0x170] sm:$0xff]
        %v1443 = vld [vmem:[#allocation8 + $0x178] sm:$0xff]
        %v1444 = vld [vmem:[#allocation8 + $0x180] sm:$0xff]
        %v1445 = vld [vmem:[#allocation8 + $0x188] sm:$0xff]
        %v1446 = vld [vmem:[#allocation8 + $0x190] sm:$0xff]
        %v1447 = vld [vmem:[#allocation8 + $0x198] sm:$0xff]
        %v1448 = vld [vmem:[#allocation8 + $0x1a0] sm:$0xff]
        %v1449 = vld [vmem:[#allocation8 + $0x1a8] sm:$0xff]
        %v1450 = vld [vmem:[#allocation8 + $0x1b0] sm:$0xff]
        %v1451 = vld [vmem:[#allocation8 + $0x1b8] sm:$0xff]
        %v1452 = vld [vmem:[#allocation8 + $0x1c0] sm:$0xff]
        %v1453 = vld [vmem:[#allocation8 + $0x1c8] sm:$0xff]
        %v1454 = vld [vmem:[#allocation8 + $0x1d0] sm:$0xff]
        %v1455 = vld [vmem:[#allocation8 + $0x1d8] sm:$0xff]
        %v1456 = vld [vmem:[#allocation8 + $0x1e0] sm:$0xff]
        %v1457 = vld [vmem:[#allocation8 + $0x1e8] sm:$0xff]
        %v1458 = vld [vmem:[#allocation8 + $0x1f0] sm:$0xff]
        %v1459 = vld [vmem:[#allocation8 + $0x1f8] sm:$0xff]
        %v1460 = vld [vmem:[#allocation8 + $0x200] sm:$0xff]
        %v1461 = vld [vmem:[#allocation8 + $0x208] sm:$0xff]
        %v1462 = vld [vmem:[#allocation8 + $0x210] sm:$0xff]
        %v1463 = vld [vmem:[#allocation8 + $0x218] sm:$0xff]
        %v1464 = vld [vmem:[#allocation8 + $0x220] sm:$0xff]
        %v1465 = vld [vmem:[#allocation8 + $0x228] sm:$0xff]
        %v1466 = vld [vmem:[#allocation8 + $0x230] sm:$0xff]
        %v1467 = vld [vmem:[#allocation8 + $0x238] sm:$0xff]
        %v1468 = vld [vmem:[#allocation8 + $0x240] sm:$0xff]
        %v1469 = vld [vmem:[#allocation8 + $0x248] sm:$0xff]
        %v1470 = vld [vmem:[#allocation8 + $0x250] sm:$0xff]
        %v1471 = vld [vmem:[#allocation8 + $0x258] sm:$0xff]
        %v1472 = vld [vmem:[#allocation8 + $0x260] sm:$0xff]
        %v1473 = vld [vmem:[#allocation8 + $0x268] sm:$0xff]
        %v1474 = vld [vmem:[#allocation8 + $0x270] sm:$0xff]
        %v1475 = vld [vmem:[#allocation8 + $0x278] sm:$0xff]
        %v1476 = vld [vmem:[#allocation8 + $0x280] sm:$0xff]
        %v1477 = vld [vmem:[#allocation8 + $0x288] sm:$0xff]
        %v1478 = vld [vmem:[#allocation8 + $0x290] sm:$0xff]
        %v1479 = vld [vmem:[#allocation8 + $0x298] sm:$0xff]
        %v1480 = vld [vmem:[#allocation8 + $0x2a0] sm:$0xff]
        %v1481 = vld [vmem:[#allocation8 + $0x2a8] sm:$0xff]
        %v1482 = vld [vmem:[#allocation8 + $0x2b0] sm:$0xff]
        %v1483 = vld [vmem:[#allocation8 + $0x2b8] sm:$0xff]
        %v1484 = vld [vmem:[#allocation8 + $0x2c0] sm:$0xff]
        %v1485 = vld [vmem:[#allocation8 + $0x2c8] sm:$0xff]
        %v1486 = vld [vmem:[#allocation8 + $0x2d0] sm:$0xff]
        %v1487 = vld [vmem:[#allocation8 + $0x2d8] sm:$0xff]
        %v1488 = vld [vmem:[#allocation8 + $0x2e0] sm:$0xff]
        %v1489 = vld [vmem:[#allocation8 + $0x2e8] sm:$0xff]
        %v1490 = vld [vmem:[#allocation8 + $0x2f0] sm:$0xff]
        %v1491 = vld [vmem:[#allocation8 + $0x2f8] sm:$0xff]
        %v1492 = vld [vmem:[#allocation8 + $0x300] sm:$0xff]
        %v1493 = vld [vmem:[#allocation8 + $0x308] sm:$0xff]
        %v1494 = vld [vmem:[#allocation8 + $0x310] sm:$0xff]
        %v1495 = vld [vmem:[#allocation8 + $0x318] sm:$0xff]
        %v1496 = vld [vmem:[#allocation8 + $0x320] sm:$0xff]
        %v1497 = vld [vmem:[#allocation8 + $0x328] sm:$0xff]
        %v1498 = vld [vmem:[#allocation8 + $0x330] sm:$0xff]
        %v1499 = vld [vmem:[#allocation8 + $0x338] sm:$0xff]
        %v1500 = vld [vmem:[#allocation8 + $0x340] sm:$0xff]
        %v1501 = vld [vmem:[#allocation8 + $0x348] sm:$0xff]
        %v1502 = vld [vmem:[#allocation8 + $0x350] sm:$0xff]
        %v1503 = vld [vmem:[#allocation8 + $0x358] sm:$0xff]
        %v1504 = vld [vmem:[#allocation8 + $0x360] sm:$0xff]
        %v1505 = vld [vmem:[#allocation8 + $0x368] sm:$0xff]
        %v1506 = vld [vmem:[#allocation8 + $0x370] sm:$0xff]
        %v1507 = vld [vmem:[#allocation8 + $0x378] sm:$0xff]
        %v1508 = vld [vmem:[#allocation8 + $0x380] sm:$0xff]
        %v1509 = vld [vmem:[#allocation8 + $0x388] sm:$0xff]
        %v1510 = vld [vmem:[#allocation8 + $0x390] sm:$0xff]
        %v1511 = vld [vmem:[#allocation8 + $0x398] sm:$0xff]
        %v1512 = vld [vmem:[#allocation8 + $0x3a0] sm:$0xff]
        %v1513 = vld [vmem:[#allocation8 + $0x3a8] sm:$0xff]
        %v1514 = vld [vmem:[#allocation8 + $0x3b0] sm:$0xff]
        %v1515 = vld [vmem:[#allocation8 + $0x3b8] sm:$0xff]
        %v1516 = vld [vmem:[#allocation8 + $0x3c0] sm:$0xff]
        %v1517 = vld [vmem:[#allocation8 + $0x3c8] sm:$0xff]
        %v1518 = vld [vmem:[#allocation8 + $0x3d0] sm:$0xff]
        %v1519 = vld [vmem:[#allocation8 + $0x3d8] sm:$0xff]
        %v1520 = vld [vmem:[#allocation8 + $0x3e0] sm:$0xff]
        %v1521 = vld [vmem:[#allocation8 + $0x3e8] sm:$0xff]
        %v1522 = vld [vmem:[#allocation8 + $0x3f0] sm:$0xff]
        %v1523 = vld [vmem:[#allocation8 + $0x3f8] sm:$0xff]
        %v1524 = vld [vmem:[#allocation8 + $0x400] sm:$0xff]
        %v1525 = vld [vmem:[#allocation8 + $0x408] sm:$0xff]
        %v1526 = vld [vmem:[#allocation8 + $0x410] sm:$0xff]
        %v1527 = vld [vmem:[#allocation8 + $0x418] sm:$0xff]
        %v1528 = vld [vmem:[#allocation8 + $0x420] sm:$0xff]
        %v1529 = vld [vmem:[#allocation8 + $0x428] sm:$0xff]
        %v1530 = vld [vmem:[#allocation8 + $0x430] sm:$0xff]
        %v1531 = vld [vmem:[#allocation8 + $0x438] sm:$0xff]
        %v1532 = vld [vmem:[#allocation8 + $0x440] sm:$0xff]
        %v1533 = vld [vmem:[#allocation8 + $0x448] sm:$0xff]
        %v1534 = vld [vmem:[#allocation8 + $0x450] sm:$0xff]
        %v1535 = vld [vmem:[#allocation8 + $0x458] sm:$0xff]
        %v1536 = vld [vmem:[#allocation8 + $0x460] sm:$0xff]
        %v1537 = vld [vmem:[#allocation8 + $0x468] sm:$0xff]
        %v1538 = vld [vmem:[#allocation8 + $0x470] sm:$0xff]
        %v1539 = vld [vmem:[#allocation8 + $0x478] sm:$0xff]
        %v1540 = vld [vmem:[%s6] sm:$0x1]
        %v1542 = vperm.slane %v1540, 0
        %1544 = vmatpush.msra.mxu0 %v1411
        %1545 = vmatpush.msra.mxu0 %v1410
        %1546 = vmatpush.msra.mxu0 %v1409
        %1547 = vmatpush.msra.mxu0 %v1408
        %1548 = vmatpush.msra.mxu0 %v1407
        %1549 = vmatpush.msra.mxu0 %v1406
        %1550 = vmatpush.msra.mxu0 %v1405
        %1551 = vmatpush.msra.mxu0 %v1404
        %1552 = vmatpush.msra.mxu0 %v1403
        %1553 = vmatpush.msra.mxu0 %v1402
        %1554 = vmatpush.msra.mxu0 %v1401
        %1555 = vmatpush.msra.mxu0 %v1400
        %1556 = vmatpush.msra.mxu0 %v1399
        %1557 = vmatpush.msra.mxu0 %v1398
        %1558 = vmatpush.msra.mxu0 %v1397
        %1559 = vmatpush.msra.mxu0 %v1396
        %1560 = vmatmul.f32.gmra.mxu0 %v1324
        %v1561 = vpop.f32.mrf.mxu0
        %v1562 = vadd.f32 %v1542, %v1561
        %1563 = vmatmul.f32.gmra.mxu0 %v1333
        %v1564 = vpop.f32.mrf.mxu0
        %v1565 = vadd.f32 %v1542, %v1564
        %1566 = vmatmul.f32.gmra.mxu0 %v1342
        %v1567 = vpop.f32.mrf.mxu0
        %v1568 = vadd.f32 %v1542, %v1567
        %1569 = vmatmul.f32.gmra.mxu0 %v1351
        %v1570 = vpop.f32.mrf.mxu0
        %v1571 = vadd.f32 %v1542, %v1570
        %1572 = vmatmul.f32.gmra.mxu0 %v1360
        %v1573 = vpop.f32.mrf.mxu0
        %v1574 = vadd.f32 %v1542, %v1573
        %1575 = vmatmul.f32.gmra.mxu0 %v1369
        %v1576 = vpop.f32.mrf.mxu0
        %v1577 = vadd.f32 %v1542, %v1576
        %1578 = vmatmul.f32.gmra.mxu0 %v1378
        %v1579 = vpop.f32.mrf.mxu0
        %v1580 = vadd.f32 %v1542, %v1579
        %1581 = vmatmul.f32.gmra.mxu0 %v1387
        %v1582 = vpop.f32.mrf.mxu0
        %v1583 = vadd.f32 %v1542, %v1582
        %1584 = vdwg.mxu0
        %1585 = vmatpush.msra.mxu0 %v1427
        %1586 = vmatpush.msra.mxu0 %v1426
        %1587 = vmatpush.msra.mxu0 %v1425
        %1588 = vmatpush.msra.mxu0 %v1424
        %1589 = vmatpush.msra.mxu0 %v1423
        %1590 = vmatpush.msra.mxu0 %v1422
        %1591 = vmatpush.msra.mxu0 %v1421
        %1592 = vmatpush.msra.mxu0 %v1420
        %1593 = vmatpush.msra.mxu0 %v1419
        %1594 = vmatpush.msra.mxu0 %v1418
        %1595 = vmatpush.msra.mxu0 %v1417
        %1596 = vmatpush.msra.mxu0 %v1416
        %1597 = vmatpush.msra.mxu0 %v1415
        %1598 = vmatpush.msra.mxu0 %v1414
        %1599 = vmatpush.msra.mxu0 %v1413
        %1600 = vmatpush.msra.mxu0 %v1412
        %1601 = vmatmul.f32.gmra.mxu0 %v1325
        %v1602 = vpop.f32.mrf.mxu0
        %v1603 = vadd.f32 %v1562, %v1602
        %1604 = vmatmul.f32.gmra.mxu0 %v1334
        %v1605 = vpop.f32.mrf.mxu0
        %v1606 = vadd.f32 %v1565, %v1605
        %1607 = vmatmul.f32.gmra.mxu0 %v1343
        %v1608 = vpop.f32.mrf.mxu0
        %v1609 = vadd.f32 %v1568, %v1608
        %1610 = vmatmul.f32.gmra.mxu0 %v1352
        %v1611 = vpop.f32.mrf.mxu0
        %v1612 = vadd.f32 %v1571, %v1611
        %1613 = vmatmul.f32.gmra.mxu0 %v1361
        %v1614 = vpop.f32.mrf.mxu0
        %v1615 = vadd.f32 %v1574, %v1614
        %1616 = vmatmul.f32.gmra.mxu0 %v1370
        %v1617 = vpop.f32.mrf.mxu0
        %v1618 = vadd.f32 %v1577, %v1617
        %1619 = vmatmul.f32.gmra.mxu0 %v1379
        %v1620 = vpop.f32.mrf.mxu0
        %v1621 = vadd.f32 %v1580, %v1620
        %1622 = vmatmul.f32.gmra.mxu0 %v1388
        %v1623 = vpop.f32.mrf.mxu0
        %v1624 = vadd.f32 %v1583, %v1623
        %1625 = vdwg.mxu0
        %1626 = vmatpush.msra.mxu0 %v1443
        %1627 = vmatpush.msra.mxu0 %v1442
        %1628 = vmatpush.msra.mxu0 %v1441
        %1629 = vmatpush.msra.mxu0 %v1440
        %1630 = vmatpush.msra.mxu0 %v1439
        %1631 = vmatpush.msra.mxu0 %v1438
        %1632 = vmatpush.msra.mxu0 %v1437
        %1633 = vmatpush.msra.mxu0 %v1436
        %1634 = vmatpush.msra.mxu0 %v1435
        %1635 = vmatpush.msra.mxu0 %v1434
        %1636 = vmatpush.msra.mxu0 %v1433
        %1637 = vmatpush.msra.mxu0 %v1432
        %1638 = vmatpush.msra.mxu0 %v1431
        %1639 = vmatpush.msra.mxu0 %v1430
        %1640 = vmatpush.msra.mxu0 %v1429
        %1641 = vmatpush.msra.mxu0 %v1428
        %1642 = vmatmul.f32.gmra.mxu0 %v1326
        %v1643 = vpop.f32.mrf.mxu0
        %v1644 = vadd.f32 %v1603, %v1643
        %1645 = vmatmul.f32.gmra.mxu0 %v1335
        %v1646 = vpop.f32.mrf.mxu0
        %v1647 = vadd.f32 %v1606, %v1646
        %1648 = vmatmul.f32.gmra.mxu0 %v1344
        %v1649 = vpop.f32.mrf.mxu0
        %v1650 = vadd.f32 %v1609, %v1649
        %1651 = vmatmul.f32.gmra.mxu0 %v1353
        %v1652 = vpop.f32.mrf.mxu0
        %v1653 = vadd.f32 %v1612, %v1652
        %1654 = vmatmul.f32.gmra.mxu0 %v1362
        %v1655 = vpop.f32.mrf.mxu0
        %v1656 = vadd.f32 %v1615, %v1655
        %1657 = vmatmul.f32.gmra.mxu0 %v1371
        %v1658 = vpop.f32.mrf.mxu0
        %v1659 = vadd.f32 %v1618, %v1658
        %1660 = vmatmul.f32.gmra.mxu0 %v1380
        %v1661 = vpop.f32.mrf.mxu0
        %v1662 = vadd.f32 %v1621, %v1661
        %1663 = vmatmul.f32.gmra.mxu0 %v1389
        %v1664 = vpop.f32.mrf.mxu0
        %v1665 = vadd.f32 %v1624, %v1664
        %1666 = vdwg.mxu0
        %1667 = vmatpush.msra.mxu0 %v1459
        %1668 = vmatpush.msra.mxu0 %v1458
        %1669 = vmatpush.msra.mxu0 %v1457
        %1670 = vmatpush.msra.mxu0 %v1456
        %1671 = vmatpush.msra.mxu0 %v1455
        %1672 = vmatpush.msra.mxu0 %v1454
        %1673 = vmatpush.msra.mxu0 %v1453
        %1674 = vmatpush.msra.mxu0 %v1452
        %1675 = vmatpush.msra.mxu0 %v1451
        %1676 = vmatpush.msra.mxu0 %v1450
        %1677 = vmatpush.msra.mxu0 %v1449
        %1678 = vmatpush.msra.mxu0 %v1448
        %1679 = vmatpush.msra.mxu0 %v1447
        %1680 = vmatpush.msra.mxu0 %v1446
        %1681 = vmatpush.msra.mxu0 %v1445
        %1682 = vmatpush.msra.mxu0 %v1444
        %1683 = vmatmul.f32.gmra.mxu0 %v1327
        %v1684 = vpop.f32.mrf.mxu0
        %v1685 = vadd.f32 %v1644, %v1684
        %1686 = vmatmul.f32.gmra.mxu0 %v1336
        %v1687 = vpop.f32.mrf.mxu0
        %v1688 = vadd.f32 %v1647, %v1687
        %1689 = vmatmul.f32.gmra.mxu0 %v1345
        %v1690 = vpop.f32.mrf.mxu0
        %v1691 = vadd.f32 %v1650, %v1690
        %1692 = vmatmul.f32.gmra.mxu0 %v1354
        %v1693 = vpop.f32.mrf.mxu0
        %v1694 = vadd.f32 %v1653, %v1693
        %1695 = vmatmul.f32.gmra.mxu0 %v1363
        %v1696 = vpop.f32.mrf.mxu0
        %v1697 = vadd.f32 %v1656, %v1696
        %1698 = vmatmul.f32.gmra.mxu0 %v1372
        %v1699 = vpop.f32.mrf.mxu0
        %v1700 = vadd.f32 %v1659, %v1699
        %1701 = vmatmul.f32.gmra.mxu0 %v1381
        %v1702 = vpop.f32.mrf.mxu0
        %v1703 = vadd.f32 %v1662, %v1702
        %1704 = vmatmul.f32.gmra.mxu0 %v1390
        %v1705 = vpop.f32.mrf.mxu0
        %v1706 = vadd.f32 %v1665, %v1705
        %1707 = vdwg.mxu0
        %1708 = vmatpush.msra.mxu0 %v1475
        %1709 = vmatpush.msra.mxu0 %v1474
        %1710 = vmatpush.msra.mxu0 %v1473
        %1711 = vmatpush.msra.mxu0 %v1472
        %1712 = vmatpush.msra.mxu0 %v1471
        %1713 = vmatpush.msra.mxu0 %v1470
        %1714 = vmatpush.msra.mxu0 %v1469
        %1715 = vmatpush.msra.mxu0 %v1468
        %1716 = vmatpush.msra.mxu0 %v1467
        %1717 = vmatpush.msra.mxu0 %v1466
        %1718 = vmatpush.msra.mxu0 %v1465
        %1719 = vmatpush.msra.mxu0 %v1464
        %1720 = vmatpush.msra.mxu0 %v1463
        %1721 = vmatpush.msra.mxu0 %v1462
        %1722 = vmatpush.msra.mxu0 %v1461
        %1723 = vmatpush.msra.mxu0 %v1460
        %1724 = vmatmul.f32.gmra.mxu0 %v1328
        %v1725 = vpop.f32.mrf.mxu0
        %v1726 = vadd.f32 %v1685, %v1725
        %1727 = vmatmul.f32.gmra.mxu0 %v1337
        %v1728 = vpop.f32.mrf.mxu0
        %v1729 = vadd.f32 %v1688, %v1728
        %1730 = vmatmul.f32.gmra.mxu0 %v1346
        %v1731 = vpop.f32.mrf.mxu0
        %v1732 = vadd.f32 %v1691, %v1731
        %1733 = vmatmul.f32.gmra.mxu0 %v1355
        %v1734 = vpop.f32.mrf.mxu0
        %v1735 = vadd.f32 %v1694, %v1734
        %1736 = vmatmul.f32.gmra.mxu0 %v1364
        %v1737 = vpop.f32.mrf.mxu0
        %v1738 = vadd.f32 %v1697, %v1737
        %1739 = vmatmul.f32.gmra.mxu0 %v1373
        %v1740 = vpop.f32.mrf.mxu0
        %v1741 = vadd.f32 %v1700, %v1740
        %1742 = vmatmul.f32.gmra.mxu0 %v1382
        %v1743 = vpop.f32.mrf.mxu0
        %v1744 = vadd.f32 %v1703, %v1743
        %1745 = vmatmul.f32.gmra.mxu0 %v1391
        %v1746 = vpop.f32.mrf.mxu0
        %v1747 = vadd.f32 %v1706, %v1746
        %1748 = vdwg.mxu0
        %1749 = vmatpush.msra.mxu0 %v1491
        %1750 = vmatpush.msra.mxu0 %v1490
        %1751 = vmatpush.msra.mxu0 %v1489
        %1752 = vmatpush.msra.mxu0 %v1488
        %1753 = vmatpush.msra.mxu0 %v1487
        %1754 = vmatpush.msra.mxu0 %v1486
        %1755 = vmatpush.msra.mxu0 %v1485
        %1756 = vmatpush.msra.mxu0 %v1484
        %1757 = vmatpush.msra.mxu0 %v1483
        %1758 = vmatpush.msra.mxu0 %v1482
        %1759 = vmatpush.msra.mxu0 %v1481
        %1760 = vmatpush.msra.mxu0 %v1480
        %1761 = vmatpush.msra.mxu0 %v1479
        %1762 = vmatpush.msra.mxu0 %v1478
        %1763 = vmatpush.msra.mxu0 %v1477
        %1764 = vmatpush.msra.mxu0 %v1476
        %1765 = vmatmul.f32.gmra.mxu0 %v1329
        %v1766 = vpop.f32.mrf.mxu0
        %v1767 = vadd.f32 %v1726, %v1766
        %1768 = vmatmul.f32.gmra.mxu0 %v1338
        %v1769 = vpop.f32.mrf.mxu0
        %v1770 = vadd.f32 %v1729, %v1769
        %1771 = vmatmul.f32.gmra.mxu0 %v1347
        %v1772 = vpop.f32.mrf.mxu0
        %v1773 = vadd.f32 %v1732, %v1772
        %1774 = vmatmul.f32.gmra.mxu0 %v1356
        %v1775 = vpop.f32.mrf.mxu0
        %v1776 = vadd.f32 %v1735, %v1775
        %1777 = vmatmul.f32.gmra.mxu0 %v1365
        %v1778 = vpop.f32.mrf.mxu0
        %v1779 = vadd.f32 %v1738, %v1778
        %1780 = vmatmul.f32.gmra.mxu0 %v1374
        %v1781 = vpop.f32.mrf.mxu0
        %v1782 = vadd.f32 %v1741, %v1781
        %1783 = vmatmul.f32.gmra.mxu0 %v1383
        %v1784 = vpop.f32.mrf.mxu0
        %v1785 = vadd.f32 %v1744, %v1784
        %1786 = vmatmul.f32.gmra.mxu0 %v1392
        %v1787 = vpop.f32.mrf.mxu0
        %v1788 = vadd.f32 %v1747, %v1787
        %1789 = vdwg.mxu0
        %1790 = vmatpush.msra.mxu0 %v1507
        %1791 = vmatpush.msra.mxu0 %v1506
        %1792 = vmatpush.msra.mxu0 %v1505
        %1793 = vmatpush.msra.mxu0 %v1504
        %1794 = vmatpush.msra.mxu0 %v1503
        %1795 = vmatpush.msra.mxu0 %v1502
        %1796 = vmatpush.msra.mxu0 %v1501
        %1797 = vmatpush.msra.mxu0 %v1500
        %1798 = vmatpush.msra.mxu0 %v1499
        %1799 = vmatpush.msra.mxu0 %v1498
        %1800 = vmatpush.msra.mxu0 %v1497
        %1801 = vmatpush.msra.mxu0 %v1496
        %1802 = vmatpush.msra.mxu0 %v1495
        %1803 = vmatpush.msra.mxu0 %v1494
        %1804 = vmatpush.msra.mxu0 %v1493
        %1805 = vmatpush.msra.mxu0 %v1492
        %1806 = vmatmul.f32.gmra.mxu0 %v1330
        %v1807 = vpop.f32.mrf.mxu0
        %v1808 = vadd.f32 %v1767, %v1807
        %1809 = vmatmul.f32.gmra.mxu0 %v1339
        %v1810 = vpop.f32.mrf.mxu0
        %v1811 = vadd.f32 %v1770, %v1810
        %1812 = vmatmul.f32.gmra.mxu0 %v1348
        %v1813 = vpop.f32.mrf.mxu0
        %v1814 = vadd.f32 %v1773, %v1813
        %1815 = vmatmul.f32.gmra.mxu0 %v1357
        %v1816 = vpop.f32.mrf.mxu0
        %v1817 = vadd.f32 %v1776, %v1816
        %1818 = vmatmul.f32.gmra.mxu0 %v1366
        %v1819 = vpop.f32.mrf.mxu0
        %v1820 = vadd.f32 %v1779, %v1819
        %1821 = vmatmul.f32.gmra.mxu0 %v1375
        %v1822 = vpop.f32.mrf.mxu0
        %v1823 = vadd.f32 %v1782, %v1822
        %1824 = vmatmul.f32.gmra.mxu0 %v1384
        %v1825 = vpop.f32.mrf.mxu0
        %v1826 = vadd.f32 %v1785, %v1825
        %1827 = vmatmul.f32.gmra.mxu0 %v1393
        %v1828 = vpop.f32.mrf.mxu0
        %v1829 = vadd.f32 %v1788, %v1828
        %1830 = vdwg.mxu0
        %1831 = vmatpush.msra.mxu0 %v1523
        %1832 = vmatpush.msra.mxu0 %v1522
        %1833 = vmatpush.msra.mxu0 %v1521
        %1834 = vmatpush.msra.mxu0 %v1520
        %1835 = vmatpush.msra.mxu0 %v1519
        %1836 = vmatpush.msra.mxu0 %v1518
        %1837 = vmatpush.msra.mxu0 %v1517
        %1838 = vmatpush.msra.mxu0 %v1516
        %1839 = vmatpush.msra.mxu0 %v1515
        %1840 = vmatpush.msra.mxu0 %v1514
        %1841 = vmatpush.msra.mxu0 %v1513
        %1842 = vmatpush.msra.mxu0 %v1512
        %1843 = vmatpush.msra.mxu0 %v1511
        %1844 = vmatpush.msra.mxu0 %v1510
        %1845 = vmatpush.msra.mxu0 %v1509
        %1846 = vmatpush.msra.mxu0 %v1508
        %1847 = vmatmul.f32.gmra.mxu0 %v1331
        %v1848 = vpop.f32.mrf.mxu0
        %v1849 = vadd.f32 %v1808, %v1848
        %1850 = vmatmul.f32.gmra.mxu0 %v1340
        %v1851 = vpop.f32.mrf.mxu0
        %v1852 = vadd.f32 %v1811, %v1851
        %1853 = vmatmul.f32.gmra.mxu0 %v1349
        %v1854 = vpop.f32.mrf.mxu0
        %v1855 = vadd.f32 %v1814, %v1854
        %1856 = vmatmul.f32.gmra.mxu0 %v1358
        %v1857 = vpop.f32.mrf.mxu0
        %v1858 = vadd.f32 %v1817, %v1857
        %1859 = vmatmul.f32.gmra.mxu0 %v1367
        %v1860 = vpop.f32.mrf.mxu0
        %v1861 = vadd.f32 %v1820, %v1860
        %1862 = vmatmul.f32.gmra.mxu0 %v1376
        %v1863 = vpop.f32.mrf.mxu0
        %v1864 = vadd.f32 %v1823, %v1863
        %1865 = vmatmul.f32.gmra.mxu0 %v1385
        %v1866 = vpop.f32.mrf.mxu0
        %v1867 = vadd.f32 %v1826, %v1866
        %1868 = vmatmul.f32.gmra.mxu0 %v1394
        %v1869 = vpop.f32.mrf.mxu0
        %v1870 = vadd.f32 %v1829, %v1869
        %1871 = vdwg.mxu0
        %1872 = vmatpush.msra.mxu0 %v1539
        %1873 = vmatpush.msra.mxu0 %v1538
        %1874 = vmatpush.msra.mxu0 %v1537
        %1875 = vmatpush.msra.mxu0 %v1536
        %1876 = vmatpush.msra.mxu0 %v1535
        %1877 = vmatpush.msra.mxu0 %v1534
        %1878 = vmatpush.msra.mxu0 %v1533
        %1879 = vmatpush.msra.mxu0 %v1532
        %1880 = vmatpush.msra.mxu0 %v1531
        %1881 = vmatpush.msra.mxu0 %v1530
        %1882 = vmatpush.msra.mxu0 %v1529
        %1883 = vmatpush.msra.mxu0 %v1528
        %1884 = vmatpush.msra.mxu0 %v1527
        %1885 = vmatpush.msra.mxu0 %v1526
        %1886 = vmatpush.msra.mxu0 %v1525
        %1887 = vmatpush.msra.mxu0 %v1524
        %1888 = vmatmul.f32.gmra.mxu0 %v1332
        %v1889 = vpop.f32.mrf.mxu0
        %v1890 = vadd.f32 %v1849, %v1889
        %1891 = vmatmul.f32.gmra.mxu0 %v1341
        %v1892 = vpop.f32.mrf.mxu0
        %v1893 = vadd.f32 %v1852, %v1892
        %1894 = vmatmul.f32.gmra.mxu0 %v1350
        %v1895 = vpop.f32.mrf.mxu0
        %v1896 = vadd.f32 %v1855, %v1895
        %1897 = vmatmul.f32.gmra.mxu0 %v1359
        %v1898 = vpop.f32.mrf.mxu0
        %v1899 = vadd.f32 %v1858, %v1898
        %1900 = vmatmul.f32.gmra.mxu0 %v1368
        %v1901 = vpop.f32.mrf.mxu0
        %v1902 = vadd.f32 %v1861, %v1901
        %1903 = vmatmul.f32.gmra.mxu0 %v1377
        %v1904 = vpop.f32.mrf.mxu0
        %v1905 = vadd.f32 %v1864, %v1904
        %1906 = vmatmul.f32.gmra.mxu0 %v1386
        %v1907 = vpop.f32.mrf.mxu0
        %v1908 = vadd.f32 %v1867, %v1907
        %1909 = vmatmul.f32.gmra.mxu0 %v1395
        %v1910 = vpop.f32.mrf.mxu0
        %v1911 = vadd.f32 %v1870, %v1910
        %1912 = vdwg.mxu0
        %v1913 = vld [vmem:[%s7] sm:$0x1]
        %v1914 = vld [vmem:[%s8] sm:$0x1]
        %v1915 = vadd.f32 %v1890, %v1893
        %v1916 = vadd.f32 %v1915, %v1896
        %v1917 = vadd.f32 %v1916, %v1899
        %v1918 = vadd.f32 %v1917, %v1902
        %v1919 = vadd.f32 %v1918, %v1905
        %v1920 = vadd.f32 %v1919, %v1908
        %v1921 = vadd.f32 %v1920, %v1911
        %v1922 = vrot.slane %v1921, 4
        %v1923 = vadd.f32 %v1921, %v1922
        %v1924 = vrot.slane %v1923, 2
        %v1925 = vadd.f32 %v1923, %v1924
        %v1926 = vrot.slane %v1925, 1
        %v1927 = vadd.f32 %v1925, %v1926
        %v1928 = vmul.f32 %v1890, %v1890
        %v1929 = vmul.f32 %v1893, %v1893
        %v1930 = vmul.f32 %v1896, %v1896
        %v1931 = vmul.f32 %v1899, %v1899
        %v1932 = vmul.f32 %v1902, %v1902
        %v1933 = vmul.f32 %v1905, %v1905
        %v1934 = vmul.f32 %v1908, %v1908
        %v1935 = vmul.f32 %v1911, %v1911
        %v1936 = vadd.f32 %v1928, %v1929
        %v1937 = vadd.f32 %v1936, %v1930
        %v1938 = vadd.f32 %v1937, %v1931
        %v1939 = vadd.f32 %v1938, %v1932
        %v1940 = vadd.f32 %v1939, %v1933
        %v1941 = vadd.f32 %v1940, %v1934
        %v1942 = vadd.f32 %v1941, %v1935
        %v1943 = vrot.slane %v1942, 4
        %v1944 = vadd.f32 %v1942, %v1943
        %v1945 = vrot.slane %v1944, 2
        %v1946 = vadd.f32 %v1944, %v1945
        %v1947 = vrot.slane %v1946, 1
        %v1948 = vadd.f32 %v1946, %v1947
        %1949 = vmatpush.msra.mxu0 %v407
        %1950 = vmatpush.msra.mxu0 %v406
        %1951 = vmatpush.msra.mxu0 %v405
        %1952 = vmatpush.msra.mxu0 %v404
        %1953 = vmatpush.msra.mxu0 %v403
        %1954 = vmatpush.msra.mxu0 %v402
        %1955 = vmatpush.msra.mxu0 %v401
        %1956 = vmatpush.msra.mxu0 %v400
        %1957 = vmatpush.msra.mxu0 %v399
        %1958 = vmatpush.msra.mxu0 %v398
        %1959 = vmatpush.msra.mxu0 %v397
        %1960 = vmatpush.msra.mxu0 %v396
        %1961 = vmatpush.msra.mxu0 %v395
        %1962 = vmatpush.msra.mxu0 %v394
        %1963 = vmatpush.msra.mxu0 %v393
        %1964 = vmatpush.msra.mxu0 %v392
        %1965 = vmatmul.f32.gmra.mxu0 %v1927
        %v1966 = vpop.f32.mrf.mxu0
        %v1967 = vadd.f32 0.0, %v1966
        %1968 = vdwg.mxu0
        %1969 = vmatpush.msra.mxu0 %v407
        %1970 = vmatpush.msra.mxu0 %v406
        %1971 = vmatpush.msra.mxu0 %v405
        %1972 = vmatpush.msra.mxu0 %v404
        %1973 = vmatpush.msra.mxu0 %v403
        %1974 = vmatpush.msra.mxu0 %v402
        %1975 = vmatpush.msra.mxu0 %v401
        %1976 = vmatpush.msra.mxu0 %v400
        %1977 = vmatpush.msra.mxu0 %v399
        %1978 = vmatpush.msra.mxu0 %v398
        %1979 = vmatpush.msra.mxu0 %v397
        %1980 = vmatpush.msra.mxu0 %v396
        %1981 = vmatpush.msra.mxu0 %v395
        %1982 = vmatpush.msra.mxu0 %v394
        %1983 = vmatpush.msra.mxu0 %v393
        %1984 = vmatpush.msra.mxu0 %v392
        %1985 = vmatmul.f32.gmra.mxu0 %v1948
        %v1986 = vpop.f32.mrf.mxu0
        %v1987 = vadd.f32 0.0, %v1986
        %1988 = vdwg.mxu0
        %v1989 = vmul.f32 %v1967, %v1967
        %v1990 = vsub.f32 %v1987, %v1989
        %v1991 = vadd.f32 %v1990, 1e-05
        %v1992 = vrsqrt.pop %v1991
        %v1993 = vmul.f32 %v1992, %v1991
        %v1994 = vmul.f32 %v1993, %v1992
        %v1995 = vmul.f32 0.5, %v1994
        %v1996 = vsub.f32 1.5, %v1995
        %v1997 = vmul.f32 %v1992, %v1996
        %vm1998 = vweird.f32 %v1991
        %vm1999 = vweird.f32 %v1992
        %vm2000 = vmor %vm1998, %vm1999
        %v2001 = vsel %vm2000, %v1992, %v1997
        %v2002 = vmul.f32 %v2001, %v1913
        %v2003 = vmul.f32 %v1967, %v2002
        %v2004 = vsub.f32 %v1914, %v2003
        %v2005 = vperm.slane %v2002, 0
        %v2006 = vmul.f32 %v1890, %v2005
        %v2007 = vmul.f32 %v1893, %v2005
        %v2008 = vmul.f32 %v1896, %v2005
        %v2009 = vmul.f32 %v1899, %v2005
        %v2010 = vmul.f32 %v1902, %v2005
        %v2011 = vmul.f32 %v1905, %v2005
        %v2012 = vmul.f32 %v1908, %v2005
        %v2013 = vmul.f32 %v1911, %v2005
        %v2015 = vperm.slane %v2004, 0
        %v2017 = vadd.f32 %v2006, %v2015
        %v2018 = vadd.f32 %v2007, %v2015
        %v2019 = vadd.f32 %v2008, %v2015
        %v2020 = vadd.f32 %v2009, %v2015
        %v2021 = vadd.f32 %v2010, %v2015
        %v2022 = vadd.f32 %v2011, %v2015
        %v2023 = vadd.f32 %v2012, %v2015
        %v2024 = vadd.f32 %v2013, %v2015
        %v2025 = vmax.f32 %v2017, 0.0
        %v2026 = vmax.f32 %v2018, 0.0
        %v2027 = vmax.f32 %v2019, 0.0
        %v2028 = vmax.f32 %v2020, 0.0
        %v2029 = vmax.f32 %v2021, 0.0
        %v2030 = vmax.f32 %v2022, 0.0
        %v2031 = vmax.f32 %v2023, 0.0
        %v2032 = vmax.f32 %v2024, 0.0
        %2033 = vst [vmem:[%s386] sm:$0xff] %v2025
        %2034 = vst [vmem:[%s386 + $0x8] sm:$0xff] %v2026
        %2035 = vst [vmem:[%s386 + $0x10] sm:$0xff] %v2027
        %2036 = vst [vmem:[%s386 + $0x18] sm:$0xff] %v2028
        %2037 = vst [vmem:[%s386 + $0x20] sm:$0xff] %v2029
        %2038 = vst [vmem:[%s386 + $0x28] sm:$0xff] %v2030
        %2039 = vst [vmem:[%s386 + $0x30] sm:$0xff] %v2031
        %2040 = vst [vmem:[%s386 + $0x38] sm:$0xff] %v2032
        %s2041 = sand.u32 %s249, 1
        %s2042 = scalar_lea.sflag [#allocation7], %s2041
        %s2043 = sand.u32 %s249, 1
        %s2044 = smul.addr %s2043, 64
        %s2045 = scalar_lea.vmem [#allocation10], %s2044
        // Predicated region
        $region69: #{tpu_custom_call.1} parent=59 // pred_check
          %p2046 = pneg %p259
        $region70: #{tpu_custom_call.1} parent=59 // pred_check_branch
          %2048 = sbr.rel (%p2046) target = $region72
        $region71: #{tpu_custom_call.1} parent=59 // pred_region
          %2050 = vsyncadd %s2042, 0
          %s2051 = smul.addr %s26, 8
          %s2052 = smul.addr %s2051, 8
          %s2053 = scalar_lea.hbm %s10, %s2052
          %s2054 = sshll.u32 %s2045, 4
          %s2055 = int_to_ptr.vmem [resolvable:$true] %s2054
          %s2056 = sshll.u32 %s2053, 4
          %s2057 = int_to_ptr.hbm [resolvable:$true] %s2056
          %2062 = dma.vmem_to_hbm [thread:$0]  %s2055, 1024, %s2057, %s2042, 128, 128, 8
        $region72: #{tpu_custom_call.1} parent=59 // pred_fallthru
          _
      $region60: #{tpu_custom_call.1} parent=5 // pred_fallthru
        _
      %p2063 = scmp.le.s32.totalorder 2, %s21
      // Predicated region
      $region73: #{tpu_custom_call.1} parent=5 // pred_check
        %p2064 = pneg %p2063
      $region74: #{tpu_custom_call.1} parent=5 // pred_check_branch
        %2066 = sbr.rel (%p2064) target = $region76
      $region75: #{tpu_custom_call.1} parent=5 // pred_region
        %s2067 = ssub.s32 %s21, 2
        // Predicated region
        $region77: #{tpu_custom_call.1} parent=75 // pred_check
          %p2068 = pneg %p265
        $region78: #{tpu_custom_call.1} parent=75 // pred_check_branch
          %2070 = sbr.rel (%p2068) target = $region80
        $region79: #{tpu_custom_call.1} parent=75 // pred_region
          %s2071 = sand.u32 %s250, 1
          %s2072 = scalar_lea.sflag [#allocation7], %s2071
          %s2073 = sand.u32 %s250, 1
          %s2074 = smul.addr %s2073, 64
          %s2075 = scalar_lea.vmem [#allocation10], %s2074
          %2077 = dma.done %s2072, 1024
        $region80: #{tpu_custom_call.1} parent=75 // pred_fallthru
          _
      $region76: #{tpu_custom_call.1} parent=5 // pred_fallthru
        _
    $region6: #{tpu_custom_call.1} parent=1 // loop_footer
      %s25 = sadd.s32 1, %s21
    $region7: #{tpu_custom_call.1} parent=1 // loop_footer_branch
      %20 = sbr.rel target = $region3
    $region8: #{tpu_custom_call.1} parent=1 // loop_exit
      _
    %2078 = vsyncpa [#allocation6], 1
    %s2079 = scalar_lea.sflag [#allocation6], 1
    %2080 = vsyncpa %s2079, 1
    %2081 = vsyncpa [#allocation9], 1
    %2082 = vsyncpa [#allocation7], 1
    %s2083 = scalar_lea.sflag [#allocation7], 1
    %2084 = vsyncpa %s2083, 1

</llo_original>
